<compile_context>
chip_gen: v5e
topology: v5e:2x2
jax: 0.10.0
libtpu: 0.0.40
codegen_flags: <defaults>
</compile_context>

<pallas_src>
import jax
import jax.numpy as jnp
from jax.experimental import pallas as pl
from jax.experimental.pallas import tpu as pltpu

# ----------------------------- tiny encoder config -----------------------------
VOCAB = 100
MAX_POS = 32
HIDDEN = 32
HEADS = 4
HEAD_DIM = HIDDEN // HEADS
FFN = 64
LAYERS = 2
LN_EPS = 1e-5

# -------- packed small-vector operand layout (one (NVEC, VEC_W) f32 array) ------
VEC_W = max(FFN, HIDDEN, 3 * HEAD_DIM)                     # 64
VROW_EMB_G, VROW_EMB_B, VROW_POOL_B = 0, 1, 2
VROW_LAYER0 = 3
# per layer: HEADS rows of per-head [bq | bk | bv] (width 3*HEAD_DIM), then
#            bo, ln1_g, ln1_b, bi, bf, ln2_g, ln2_b
VROWS_PER_LAYER = HEADS + 7
NVEC = VROW_LAYER0 + LAYERS * VROWS_PER_LAYER
R_BO, R_LN1G, R_LN1B, R_BI, R_BF, R_LN2G, R_LN2B = (
    HEADS + 0, HEADS + 1, HEADS + 2, HEADS + 3, HEADS + 4, HEADS + 5, HEADS + 6)


# ------------------------------ fused encoder kernel ----------------------------
def _encoder_kernel(emb_ref, mask_ref, vec_ref, wqkv_ref, wout_ref, wmlp_ref,
                    hid_ref, pool_ref):
    H, NH, DH = HIDDEN, HEADS, HEAD_DIM
    S = emb_ref.shape[1]
    scale = 1.0 / float(DH) ** 0.5

    def vec(row, width=HIDDEN):                     # (1, width) f32 slice of the pack
        return vec_ref[row:row + 1, :width]

    def layernorm(x, g_row, b_row):
        mu = jnp.mean(x, axis=-1, keepdims=True)
        var = jnp.mean(jnp.square(x - mu), axis=-1, keepdims=True)
        return (x - mu) * jax.lax.rsqrt(var + LN_EPS) * vec(g_row) + vec(b_row)

    def dense(x_f32, w_bf16, b_f32):                # bf16 MXU matmul, f32 epilogue
        return jnp.dot(x_f32.astype(jnp.bfloat16), w_bf16,
                       preferred_element_type=jnp.float32) + b_f32

    # ---- embeddings: LayerNorm only (no materialized zero residual) ----
    h = layernorm(emb_ref[0], VROW_EMB_G, VROW_EMB_B)            # (S, H) f32
    hid_ref[0, 0] = h

    # ---- additive attention-mask bias, built in-kernel from the (1, 1, S) mask ----
    bias3 = (1.0 - mask_ref[...]) * -1e9                         # (1, 1, S)

    # ---- encoder layers (static unroll; whole model is VMEM-resident) ----
    for li in range(LAYERS):
        base = VROW_LAYER0 + li * VROWS_PER_LAYER
        x = h

        # fused, head-batched QKV projection: ONE einsum over all heads
        xb = jnp.broadcast_to(x.astype(jnp.bfloat16)[None], (NH, S, H))
        bqkv = vec_ref[base:base + NH, :3 * DH]                  # (NH, 3*DH) f32
        qkv = jnp.einsum("hsk,hkd->hsd", xb, wqkv_ref[li],
                         preferred_element_type=jnp.float32) + bqkv[:, None, :]
        q = qkv[..., :DH].astype(jnp.bfloat16)                   # (NH, S, DH)
        k = qkv[..., DH:2 * DH].astype(jnp.bfloat16)
        v = qkv[..., 2 * DH:].astype(jnp.bfloat16)

        # attention: single batched contraction over all heads (no per-head loop)
        s = jnp.einsum("hqd,hkd->hqk", q, k,
                       preferred_element_type=jnp.float32) * scale + bias3
        s = s - jnp.max(s, axis=-1, keepdims=True)
        p = jnp.exp(s)
        p = p * pl.reciprocal(jnp.sum(p, axis=-1, keepdims=True), approx=True)
        ctx = jnp.einsum("hqk,hkd->hqd", p.astype(jnp.bfloat16), v,
                         preferred_element_type=jnp.float32)     # (NH, S, DH)

        # head-batched output projection + head sum (replaces the lane concat)
        per_head = jnp.einsum("hsd,hdn->hsn", ctx.astype(jnp.bfloat16),
                              wout_ref[li], preferred_element_type=jnp.float32)
        attn_out = jnp.sum(per_head, axis=0) + vec(base + R_BO)  # (S, H)
        h1 = layernorm(attn_out + x, base + R_LN1G, base + R_LN1B)

        # FFN (weights sliced out of the packed MLP operand)
        wi = wmlp_ref[li, :H, :]                                 # (H, FFN) bf16
        wf = wmlp_ref[li, H:, :H]                                # (FFN, H) bf16
        # TODO(synk): HF XLM-R uses the exact (erf) GELU; tanh approximation used here.
        ff = jax.nn.gelu(dense(h1, wi, vec(base + R_BI, FFN)), approximate=True)
        ff2 = dense(ff, wf, vec(base + R_BF))
        h = layernorm(ff2 + h1, base + R_LN2G, base + R_LN2B)
        hid_ref[li + 1, 0] = h

    # ---- pooler: dense + tanh on the [CLS] (first) token ----
    pool_w = wmlp_ref[LAYERS, :H, :H]                            # (H, H) bf16
    pool_ref[0] = jnp.tanh(dense(h[0:1, :], pool_w, vec(VROW_POOL_B)))


# -------------------------------- parameter init --------------------------------
def _dense_w(key, fan_in, fan_out):
    return (jax.random.normal(key, (fan_in, fan_out), jnp.float32) * 0.02).astype(
        jnp.bfloat16)


def init_params(key):
    keys = jax.random.split(key, 4 + LAYERS)
    params = {
        "word_emb": jax.random.normal(keys[0], (VOCAB, HIDDEN), jnp.float32) * 0.02,
        "pos_emb": jax.random.normal(keys[1], (MAX_POS, HIDDEN), jnp.float32) * 0.02,
        "type_emb": jax.random.normal(keys[2], (1, HIDDEN), jnp.float32) * 0.02,
    }

    def row(v):                                    # pad a 1-D vector to VEC_W
        v = jnp.asarray(v, jnp.float32)
        return jnp.pad(v, (0, VEC_W - v.shape[0]))

    ones_h = jnp.ones((HIDDEN,), jnp.float32)
    zeros_h = jnp.zeros((HIDDEN,), jnp.float32)
    rows = [row(ones_h), row(zeros_h), row(zeros_h)]   # emb_ln_g, emb_ln_b, pool_b

    wqkv_heads, wout_heads, wmlp = [], [], []
    for li in range(LAYERS):
        lk = jax.random.split(keys[3 + li], 6)
        wq = _dense_w(lk[0], HIDDEN, HIDDEN)
        wk = _dense_w(lk[1], HIDDEN, HIDDEN)
        wv = _dense_w(lk[2], HIDDEN, HIDDEN)
        wo = _dense_w(lk[3], HIDDEN, HIDDEN)
        wi = _dense_w(lk[4], HIDDEN, FFN)
        wf = _dense_w(lk[5], FFN, HIDDEN)

        # head-major QKV slab: per head h, columns [Wq_h | Wk_h | Wv_h] -> (NH, H, 3*DH)
        wq_h = wq.reshape(HIDDEN, HEADS, HEAD_DIM).transpose(1, 0, 2)
        wk_h = wk.reshape(HIDDEN, HEADS, HEAD_DIM).transpose(1, 0, 2)
        wv_h = wv.reshape(HIDDEN, HEADS, HEAD_DIM).transpose(1, 0, 2)
        wqkv_heads.append(jnp.concatenate([wq_h, wk_h, wv_h], axis=-1))
        # head-major output projection: (NH, DH, H)
        wout_heads.append(wo.reshape(HEADS, HEAD_DIM, HIDDEN))
        # packed MLP slab: rows [0:H] = wi, rows [H:H+FFN] = wf (cols padded to FFN)
        wmlp.append(jnp.concatenate(
            [wi, jnp.pad(wf, ((0, 0), (0, FFN - HIDDEN)))], axis=0))

        # per-layer small vectors (per-head [bq | bk | bv] rows, then the rest)
        bq = bk = bv = zeros_h
        for hh in range(HEADS):
            sl = slice(hh * HEAD_DIM, (hh + 1) * HEAD_DIM)
            rows.append(row(jnp.concatenate([bq[sl], bk[sl], bv[sl]])))
        rows += [row(zeros_h),                       # bo
                 row(ones_h), row(zeros_h),          # ln1_g, ln1_b
                 row(jnp.zeros((FFN,), jnp.float32)),  # bi
                 row(zeros_h),                       # bf
                 row(ones_h), row(zeros_h)]          # ln2_g, ln2_b

    # pooler weight rides in the MLP slab as an extra "layer" entry
    pool_w = _dense_w(keys[3 + LAYERS], HIDDEN, HIDDEN)
    wmlp.append(jnp.pad(pool_w, ((0, FFN), (0, FFN - HIDDEN))))

    params["vecs"] = jnp.stack(rows)                 # (NVEC, VEC_W) f32
    params["w_qkv"] = jnp.stack(wqkv_heads)          # (LAYERS, NH, H, 3*DH) bf16
    params["w_out"] = jnp.stack(wout_heads)          # (LAYERS, NH, DH, H) bf16
    params["w_mlp"] = jnp.stack(wmlp)                # (LAYERS+1, H+FFN, FFN) bf16
    return params


# ----------------------------------- forward ------------------------------------
def pretrained_embedder_forward(params, inp_ids, attn_mask):
    """Mirrors `self.model(input_ids=..., attention_mask=...)` with
    output_hidden_states=True: returns last_hidden_state, pooler_output and the
    tuple of all hidden states (embeddings + each layer)."""
    B, S = inp_ids.shape

    # ---- embeddings (table gather is host-side glue; everything else in-kernel) ----
    # TODO(synk): XLM-R position ids are offset by padding_idx+1 and skip pad
    # positions; a plain arange positional embedding is used here.
    word = jnp.take(params["word_emb"], inp_ids, axis=0)          # (B, S, H)
    pos = params["pos_emb"][:S][None, :, :]                       # (1, S, H)
    tok = params["type_emb"][None, :, :]                          # (1, 1, H)
    emb = (word + pos + tok).astype(jnp.float32)                  # (B, S, H)
    mask_f = attn_mask.astype(jnp.float32)[:, None, :]            # (B, 1, S)

    hid, pooled = pl.pallas_call(
        _encoder_kernel,
        out_shape=(
            jax.ShapeDtypeStruct((LAYERS + 1, B, S, HIDDEN), jnp.float32),
            jax.ShapeDtypeStruct((B, 1, HIDDEN), jnp.float32),
        ),
        grid_spec=pltpu.PrefetchScalarGridSpec(
            num_scalar_prefetch=0,
            grid=(B,),
            in_specs=[
                pl.BlockSpec((1, S, HIDDEN), lambda b: (b, 0, 0)),      # embeddings
                pl.BlockSpec((1, 1, S), lambda b: (b, 0, 0)),           # attn mask
                pl.BlockSpec((NVEC, VEC_W), lambda b: (0, 0)),          # packed vectors
                pl.BlockSpec((LAYERS, HEADS, HIDDEN, 3 * HEAD_DIM),
                             lambda b: (0, 0, 0, 0)),                   # QKV (head-major)
                pl.BlockSpec((LAYERS, HEADS, HEAD_DIM, HIDDEN),
                             lambda b: (0, 0, 0, 0)),                   # out proj
                pl.BlockSpec((LAYERS + 1, HIDDEN + FFN, FFN),
                             lambda b: (0, 0, 0)),                      # MLP + pooler W
            ],
            out_specs=(
                pl.BlockSpec((LAYERS + 1, 1, S, HIDDEN), lambda b: (0, b, 0, 0)),
                pl.BlockSpec((1, 1, HIDDEN), lambda b: (b, 0, 0)),
            ),
        ),
        compiler_params=pltpu.CompilerParams(dimension_semantics=("parallel",)),
    )(emb, mask_f, params["vecs"], params["w_qkv"], params["w_out"], params["w_mlp"])

    hidden_states = tuple(hid[i] for i in range(LAYERS + 1))       # each (B, S, H)
    return {
        "last_hidden_state": hidden_states[-1],
        "pooler_output": pooled[:, 0, :],
        "hidden_states": hidden_states,
    }


# ------------------------------------- main --------------------------------------
if __name__ == "__main__":
    key = jax.random.PRNGKey(0)
    k_ids, k_params = jax.random.split(key)

    B, S = 2, 8
    inp_ids = jax.random.randint(k_ids, (B, S), 0, VOCAB, dtype=jnp.int32)
    attn_mask = jnp.ones((B, S), dtype=jnp.int32).at[1, 6:].set(0)  # pad sample 1

    params = init_params(k_params)

    fwd = jax.jit(pretrained_embedder_forward)
    out = fwd(params, inp_ids, attn_mask)
    jax.block_until_ready(out["last_hidden_state"])
    jax.block_until_ready(out["pooler_output"])

    assert out["last_hidden_state"].shape == (B, S, HIDDEN)
    assert out["pooler_output"].shape == (B, HIDDEN)
    assert len(out["hidden_states"]) == LAYERS + 1
    assert bool(jnp.all(jnp.isfinite(out["last_hidden_state"])))
    assert bool(jnp.all(jnp.isfinite(out["pooler_output"])))
    print("KERNEL_OK")
</pallas_src>

<mosaic_0001>
module attributes {stable_mosaic.version = 11 : i64} {
  func.func @_encoder_kernel(%arg0: i32, %arg1: memref<1x8x32xf32, #tpu.memory_space<vmem>>, %arg2: memref<1x1x8xf32, #tpu.memory_space<vmem>>, %arg3: memref<25x64xf32, #tpu.memory_space<vmem>>, %arg4: memref<2x4x32x24xbf16, #tpu.memory_space<vmem>>, %arg5: memref<2x4x8x32xbf16, #tpu.memory_space<vmem>>, %arg6: memref<3x96x64xbf16, #tpu.memory_space<vmem>>, %arg7: memref<3x1x8x32xf32, #tpu.memory_space<vmem>>, %arg8: memref<1x1x32xf32, #tpu.memory_space<vmem>>) attributes {dimension_semantics = [#tpu.dimension_semantics<parallel>], iteration_bounds = array<i64: 2>, scalar_prefetch = 0 : i64, scratch_operands = 0 : i64, tpu.core_type = #tpu.core_type<tc>, window_params = [{transform_indices = @transform_0, window_bounds = array<i64: 1, 8, 32>}, {transform_indices = @transform_1, window_bounds = array<i64: 1, 1, 8>}, {pipeline_mode = #tpu.pipeline_mode<synchronous>, transform_indices = @transform_2, window_bounds = array<i64: 25, 64>}, {pipeline_mode = #tpu.pipeline_mode<synchronous>, transform_indices = @transform_3, window_bounds = array<i64: 2, 4, 32, 24>}, {pipeline_mode = #tpu.pipeline_mode<synchronous>, transform_indices = @transform_4, window_bounds = array<i64: 2, 4, 8, 32>}, {pipeline_mode = #tpu.pipeline_mode<synchronous>, transform_indices = @transform_5, window_bounds = array<i64: 3, 96, 64>}, {transform_indices = @transform_6, window_bounds = array<i64: 3, 1, 8, 32>}, {transform_indices = @transform_7, window_bounds = array<i64: 1, 1, 32>}]} {
    %c0 = arith.constant 0 : index
    %c0_0 = arith.constant 0 : index
    %c0_1 = arith.constant 0 : index
    %0 = vector.load %arg1[%c0, %c0_0, %c0_1] : memref<1x8x32xf32, #tpu.memory_space<vmem>>, vector<1x8x32xf32>
    %1 = vector.shape_cast %0 : vector<1x8x32xf32> to vector<8x32xf32>
    %cst = arith.constant dense<0.000000e+00> : vector<8xf32>
    %2 = vector.multi_reduction <add>, %1, %cst [1] : vector<8x32xf32> to vector<8xf32>
    %3 = vector.shape_cast %2 : vector<8xf32> to vector<8x1xf32>
    %cst_2 = arith.constant 3.200000e+01 : f32
    %4 = vector.broadcast %cst_2 : f32 to vector<8x1xf32>
    %5 = arith.divf %3, %4 : vector<8x1xf32>
    %6 = vector.broadcast %5 : vector<8x1xf32> to vector<8x32xf32>
    %7 = arith.subf %1, %6 : vector<8x32xf32>
    %8 = arith.mulf %7, %7 : vector<8x32xf32>
    %cst_3 = arith.constant dense<0.000000e+00> : vector<8xf32>
    %9 = vector.multi_reduction <add>, %8, %cst_3 [1] : vector<8x32xf32> to vector<8xf32>
    %10 = vector.shape_cast %9 : vector<8xf32> to vector<8x1xf32>
    %cst_4 = arith.constant 3.200000e+01 : f32
    %11 = vector.broadcast %cst_4 : f32 to vector<8x1xf32>
    %12 = arith.divf %10, %11 : vector<8x1xf32>
    %13 = vector.broadcast %5 : vector<8x1xf32> to vector<8x32xf32>
    %14 = arith.subf %1, %13 : vector<8x32xf32>
    %cst_5 = arith.constant 9.99999974E-6 : f32
    %15 = vector.broadcast %cst_5 : f32 to vector<8x1xf32>
    %16 = arith.addf %12, %15 : vector<8x1xf32>
    %17 = math.rsqrt %16 : vector<8x1xf32>
    %18 = vector.broadcast %17 : vector<8x1xf32> to vector<8x32xf32>
    %19 = arith.mulf %14, %18 : vector<8x32xf32>
    %c0_6 = arith.constant 0 : index
    %c0_7 = arith.constant 0 : index
    %20 = vector.load %arg3[%c0_6, %c0_7] : memref<25x64xf32, #tpu.memory_space<vmem>>, vector<1x32xf32>
    %21 = vector.broadcast %20 : vector<1x32xf32> to vector<8x32xf32>
    %22 = arith.mulf %19, %21 : vector<8x32xf32>
    %c1 = arith.constant 1 : index
    %c0_8 = arith.constant 0 : index
    %23 = vector.load %arg3[%c1, %c0_8] : memref<25x64xf32, #tpu.memory_space<vmem>>, vector<1x32xf32>
    %24 = vector.broadcast %23 : vector<1x32xf32> to vector<8x32xf32>
    %25 = arith.addf %22, %24 : vector<8x32xf32>
    %c0_9 = arith.constant 0 : index
    %c0_10 = arith.constant 0 : index
    %c0_11 = arith.constant 0 : index
    %c0_12 = arith.constant 0 : index
    %26 = vector.load %arg7[%c0_9, %c0_10, %c0_11, %c0_12] : memref<3x1x8x32xf32, #tpu.memory_space<vmem>>, vector<1x1x8x32xf32>
    %27 = vector.shape_cast %26 : vector<1x1x8x32xf32> to vector<8x32xf32>
    %28 = vector.shape_cast %25 : vector<8x32xf32> to vector<1x1x8x32xf32>
    tpu.vector_store %arg7[%c0_9, %c0_10, %c0_11, %c0_12], %28 {strides = array<i32>} : memref<3x1x8x32xf32, #tpu.memory_space<vmem>>, vector<1x1x8x32xf32>,
    %c0_13 = arith.constant 0 : index
    %c0_14 = arith.constant 0 : index
    %c0_15 = arith.constant 0 : index
    %29 = vector.load %arg2[%c0_13, %c0_14, %c0_15] : memref<1x1x8xf32, #tpu.memory_space<vmem>>, vector<1x1x8xf32>
    %cst_16 = arith.constant 1.000000e+00 : f32
    %30 = vector.broadcast %cst_16 : f32 to vector<1x1x8xf32>
    %31 = arith.subf %30, %29 : vector<1x1x8xf32>
    %cst_17 = arith.constant -1.000000e+09 : f32
    %32 = vector.broadcast %cst_17 : f32 to vector<1x1x8xf32>
    %33 = arith.mulf %31, %32 : vector<1x1x8xf32>
    %34 = arith.truncf %25 : vector<8x32xf32> to vector<8x32xbf16>
    %35 = vector.shape_cast %34 : vector<8x32xbf16> to vector<1x8x32xbf16>
    %36 = vector.shape_cast %35 : vector<1x8x32xbf16> to vector<1x8x32xbf16>
    %37 = vector.broadcast %36 : vector<1x8x32xbf16> to vector<4x8x32xbf16>
    %c3 = arith.constant 3 : index
    %c0_18 = arith.constant 0 : index
    %38 = vector.load %arg3[%c3, %c0_18] : memref<25x64xf32, #tpu.memory_space<vmem>>, vector<4x24xf32>
    %c0_19 = arith.constant 0 : index
    %c0_20 = arith.constant 0 : index
    %c0_21 = arith.constant 0 : index
    %c0_22 = arith.constant 0 : index
    %39 = vector.load %arg4[%c0_19, %c0_20, %c0_21, %c0_22] : memref<2x4x32x24xbf16, #tpu.memory_space<vmem>>, vector<1x4x32x24xbf16>
    %40 = vector.shape_cast %39 : vector<1x4x32x24xbf16> to vector<4x32x24xbf16>
    "tpu.trace_start"() <{level = 10 : i32, message = "hsk,hkd->hsd"}> : () -> ()
    %cst_23 = arith.constant dense<0.000000e+00> : vector<4x8x24xf32>
    %41 = tpu.matmul %37, %40, %cst_23 {dimension_numbers = #tpu.dot_dimension_numbers<[2], [1], [1], [2], [0, 0, 0, 1, 1, 2], [0], [0]>} : vector<4x8x32xbf16>, vector<4x32x24xbf16>, vector<4x8x24xf32> -> vector<4x8x24xf32>
    "tpu.trace_stop"() : () -> ()
    %42 = vector.shape_cast %38 : vector<4x24xf32> to vector<4x1x24xf32>
    %43 = vector.broadcast %42 : vector<4x1x24xf32> to vector<4x8x24xf32>
    %44 = arith.addf %41, %43 : vector<4x8x24xf32>
    %45 = vector.extract_strided_slice %44 {offsets = [0, 0, 0], sizes = [4, 8, 8], strides = [1, 1, 1]} : vector<4x8x24xf32> to vector<4x8x8xf32>
    %46 = arith.truncf %45 : vector<4x8x8xf32> to vector<4x8x8xbf16>
    %47 = vector.extract_strided_slice %44 {offsets = [0, 0, 8], sizes = [4, 8, 8], strides = [1, 1, 1]} : vector<4x8x24xf32> to vector<4x8x8xf32>
    %48 = arith.truncf %47 : vector<4x8x8xf32> to vector<4x8x8xbf16>
    %49 = vector.extract_strided_slice %44 {offsets = [0, 0, 16], sizes = [4, 8, 8], strides = [1, 1, 1]} : vector<4x8x24xf32> to vector<4x8x8xf32>
    %50 = arith.truncf %49 : vector<4x8x8xf32> to vector<4x8x8xbf16>
    "tpu.trace_start"() <{level = 10 : i32, message = "hqd,hkd->hqk"}> : () -> ()
    %cst_24 = arith.constant dense<0.000000e+00> : vector<4x8x8xf32>
    %51 = tpu.matmul %46, %48, %cst_24 {dimension_numbers = #tpu.dot_dimension_numbers<[2], [2], [1], [1], [0, 0, 0, 1, 1, 1], [0], [0]>} : vector<4x8x8xbf16>, vector<4x8x8xbf16>, vector<4x8x8xf32> -> vector<4x8x8xf32>
    "tpu.trace_stop"() : () -> ()
    %cst_25 = arith.constant 0.353553385 : f32
    %52 = vector.broadcast %cst_25 : f32 to vector<4x8x8xf32>
    %53 = arith.mulf %51, %52 : vector<4x8x8xf32>
    %54 = vector.broadcast %33 : vector<1x1x8xf32> to vector<4x8x8xf32>
    %55 = arith.addf %53, %54 : vector<4x8x8xf32>
    %cst_26 = arith.constant dense<0xFF800000> : vector<4x8xf32>
    %56 = vector.multi_reduction <maximumf>, %55, %cst_26 [2] : vector<4x8x8xf32> to vector<4x8xf32>
    %57 = vector.shape_cast %56 : vector<4x8xf32> to vector<4x8x1xf32>
    %58 = vector.broadcast %57 : vector<4x8x1xf32> to vector<4x8x8xf32>
    %59 = arith.subf %55, %58 : vector<4x8x8xf32>
    %60 = math.exp %59 : vector<4x8x8xf32>
    %cst_27 = arith.constant dense<0.000000e+00> : vector<4x8xf32>
    %61 = vector.multi_reduction <add>, %60, %cst_27 [2] : vector<4x8x8xf32> to vector<4x8xf32>
    %62 = vector.shape_cast %61 : vector<4x8xf32> to vector<4x8x1xf32>
    %63 = tpu.reciprocal %62 {approx = true} : vector<4x8x1xf32> -> vector<4x8x1xf32>
    %64 = vector.broadcast %63 : vector<4x8x1xf32> to vector<4x8x8xf32>
    %65 = arith.mulf %60, %64 : vector<4x8x8xf32>
    %66 = arith.truncf %65 : vector<4x8x8xf32> to vector<4x8x8xbf16>
    "tpu.trace_start"() <{level = 10 : i32, message = "hqk,hkd->hqd"}> : () -> ()
    %cst_28 = arith.constant dense<0.000000e+00> : vector<4x8x8xf32>
    %67 = tpu.matmul %66, %50, %cst_28 {dimension_numbers = #tpu.dot_dimension_numbers<[2], [1], [1], [2], [0, 0, 0, 1, 1, 2], [0], [0]>} : vector<4x8x8xbf16>, vector<4x8x8xbf16>, vector<4x8x8xf32> -> vector<4x8x8xf32>
    "tpu.trace_stop"() : () -> ()
    %68 = arith.truncf %67 : vector<4x8x8xf32> to vector<4x8x8xbf16>
    %c0_29 = arith.constant 0 : index
    %c0_30 = arith.constant 0 : index
    %c0_31 = arith.constant 0 : index
    %c0_32 = arith.constant 0 : index
    %69 = vector.load %arg5[%c0_29, %c0_30, %c0_31, %c0_32] : memref<2x4x8x32xbf16, #tpu.memory_space<vmem>>, vector<1x4x8x32xbf16>
    %70 = vector.shape_cast %69 : vector<1x4x8x32xbf16> to vector<4x8x32xbf16>
    "tpu.trace_start"() <{level = 10 : i32, message = "hsd,hdn->hsn"}> : () -> ()
    %cst_33 = arith.constant dense<0.000000e+00> : vector<4x8x32xf32>
    %71 = tpu.matmul %68, %70, %cst_33 {dimension_numbers = #tpu.dot_dimension_numbers<[2], [1], [1], [2], [0, 0, 0, 1, 1, 2], [0], [0]>} : vector<4x8x8xbf16>, vector<4x8x32xbf16>, vector<4x8x32xf32> -> vector<4x8x32xf32>
    "tpu.trace_stop"() : () -> ()
    %cst_34 = arith.constant dense<0.000000e+00> : vector<8x32xf32>
    %72 = vector.multi_reduction <add>, %71, %cst_34 [0] : vector<4x8x32xf32> to vector<8x32xf32>
    %c7 = arith.constant 7 : index
    %c0_35 = arith.constant 0 : index
    %73 = vector.load %arg3[%c7, %c0_35] : memref<25x64xf32, #tpu.memory_space<vmem>>, vector<1x32xf32>
    %74 = vector.broadcast %73 : vector<1x32xf32> to vector<8x32xf32>
    %75 = arith.addf %72, %74 : vector<8x32xf32>
    %76 = arith.addf %75, %25 : vector<8x32xf32>
    %cst_36 = arith.constant dense<0.000000e+00> : vector<8xf32>
    %77 = vector.multi_reduction <add>, %76, %cst_36 [1] : vector<8x32xf32> to vector<8xf32>
    %78 = vector.shape_cast %77 : vector<8xf32> to vector<8x1xf32>
    %cst_37 = arith.constant 3.200000e+01 : f32
    %79 = vector.broadcast %cst_37 : f32 to vector<8x1xf32>
    %80 = arith.divf %78, %79 : vector<8x1xf32>
    %81 = vector.broadcast %80 : vector<8x1xf32> to vector<8x32xf32>
    %82 = arith.subf %76, %81 : vector<8x32xf32>
    %83 = arith.mulf %82, %82 : vector<8x32xf32>
    %cst_38 = arith.constant dense<0.000000e+00> : vector<8xf32>
    %84 = vector.multi_reduction <add>, %83, %cst_38 [1] : vector<8x32xf32> to vector<8xf32>
    %85 = vector.shape_cast %84 : vector<8xf32> to vector<8x1xf32>
    %cst_39 = arith.constant 3.200000e+01 : f32
    %86 = vector.broadcast %cst_39 : f32 to vector<8x1xf32>
    %87 = arith.divf %85, %86 : vector<8x1xf32>
    %88 = vector.broadcast %80 : vector<8x1xf32> to vector<8x32xf32>
    %89 = arith.subf %76, %88 : vector<8x32xf32>
    %cst_40 = arith.constant 9.99999974E-6 : f32
    %90 = vector.broadcast %cst_40 : f32 to vector<8x1xf32>
    %91 = arith.addf %87, %90 : vector<8x1xf32>
    %92 = math.rsqrt %91 : vector<8x1xf32>
    %93 = vector.broadcast %92 : vector<8x1xf32> to vector<8x32xf32>
    %94 = arith.mulf %89, %93 : vector<8x32xf32>
    %c8 = arith.constant 8 : index
    %c0_41 = arith.constant 0 : index
    %95 = vector.load %arg3[%c8, %c0_41] : memref<25x64xf32, #tpu.memory_space<vmem>>, vector<1x32xf32>
    %96 = vector.broadcast %95 : vector<1x32xf32> to vector<8x32xf32>
    %97 = arith.mulf %94, %96 : vector<8x32xf32>
    %c9 = arith.constant 9 : index
    %c0_42 = arith.constant 0 : index
    %98 = vector.load %arg3[%c9, %c0_42] : memref<25x64xf32, #tpu.memory_space<vmem>>, vector<1x32xf32>
    %99 = vector.broadcast %98 : vector<1x32xf32> to vector<8x32xf32>
    %100 = arith.addf %97, %99 : vector<8x32xf32>
    %c0_43 = arith.constant 0 : index
    %c0_44 = arith.constant 0 : index
    %c0_45 = arith.constant 0 : index
    %101 = vector.load %arg6[%c0_43, %c0_44, %c0_45] : memref<3x96x64xbf16, #tpu.memory_space<vmem>>, vector<1x32x64xbf16>
    %102 = vector.shape_cast %101 : vector<1x32x64xbf16> to vector<32x64xbf16>
    %c0_46 = arith.constant 0 : index
    %c32 = arith.constant 32 : index
    %c0_47 = arith.constant 0 : index
    %103 = vector.load %arg6[%c0_46, %c32, %c0_47] : memref<3x96x64xbf16, #tpu.memory_space<vmem>>, vector<1x64x32xbf16>
    %104 = vector.shape_cast %103 : vector<1x64x32xbf16> to vector<64x32xbf16>
    %c10 = arith.constant 10 : index
    %c0_48 = arith.constant 0 : index
    %105 = vector.load %arg3[%c10, %c0_48] : memref<25x64xf32, #tpu.memory_space<vmem>>, vector<1x64xf32>
    %106 = arith.truncf %100 : vector<8x32xf32> to vector<8x32xbf16>
    %cst_49 = arith.constant dense<0.000000e+00> : vector<8x64xf32>
    %107 = tpu.matmul %106, %102, %cst_49 {dimension_numbers = #tpu.dot_dimension_numbers<[1], [0], [0], [1], [0, 0, 1, 1], [], []>} : vector<8x32xbf16>, vector<32x64xbf16>, vector<8x64xf32> -> vector<8x64xf32>
    %108 = vector.broadcast %105 : vector<1x64xf32> to vector<8x64xf32>
    %109 = arith.addf %107, %108 : vector<8x64xf32>
    %110 = arith.mulf %109, %109 : vector<8x64xf32>
    %111 = arith.mulf %109, %110 : vector<8x64xf32>
    %cst_50 = arith.constant 4.471500e-02 : f32
    %112 = vector.broadcast %cst_50 : f32 to vector<8x64xf32>
    %113 = arith.mulf %112, %111 : vector<8x64xf32>
    %114 = arith.addf %109, %113 : vector<8x64xf32>
    %cst_51 = arith.constant 0.797884583 : f32
    %115 = vector.broadcast %cst_51 : f32 to vector<8x64xf32>
    %116 = arith.mulf %115, %114 : vector<8x64xf32>
    %117 = math.tanh %116 : vector<8x64xf32>
    %cst_52 = arith.constant 1.000000e+00 : f32
    %118 = vector.broadcast %cst_52 : f32 to vector<8x64xf32>
    %119 = arith.addf %118, %117 : vector<8x64xf32>
    %cst_53 = arith.constant 5.000000e-01 : f32
    %120 = vector.broadcast %cst_53 : f32 to vector<8x64xf32>
    %121 = arith.mulf %120, %119 : vector<8x64xf32>
    %122 = arith.mulf %109, %121 : vector<8x64xf32>
    %c11 = arith.constant 11 : index
    %c0_54 = arith.constant 0 : index
    %123 = vector.load %arg3[%c11, %c0_54] : memref<25x64xf32, #tpu.memory_space<vmem>>, vector<1x32xf32>
    %124 = arith.truncf %122 : vector<8x64xf32> to vector<8x64xbf16>
    %cst_55 = arith.constant dense<0.000000e+00> : vector<8x32xf32>
    %125 = tpu.matmul %124, %104, %cst_55 {dimension_numbers = #tpu.dot_dimension_numbers<[1], [0], [0], [1], [0, 0, 1, 1], [], []>} : vector<8x64xbf16>, vector<64x32xbf16>, vector<8x32xf32> -> vector<8x32xf32>
    %126 = vector.broadcast %123 : vector<1x32xf32> to vector<8x32xf32>
    %127 = arith.addf %125, %126 : vector<8x32xf32>
    %128 = arith.addf %127, %100 : vector<8x32xf32>
    %cst_56 = arith.constant dense<0.000000e+00> : vector<8xf32>
    %129 = vector.multi_reduction <add>, %128, %cst_56 [1] : vector<8x32xf32> to vector<8xf32>
    %130 = vector.shape_cast %129 : vector<8xf32> to vector<8x1xf32>
    %cst_57 = arith.constant 3.200000e+01 : f32
    %131 = vector.broadcast %cst_57 : f32 to vector<8x1xf32>
    %132 = arith.divf %130, %131 : vector<8x1xf32>
    %133 = vector.broadcast %132 : vector<8x1xf32> to vector<8x32xf32>
    %134 = arith.subf %128, %133 : vector<8x32xf32>
    %135 = arith.mulf %134, %134 : vector<8x32xf32>
    %cst_58 = arith.constant dense<0.000000e+00> : vector<8xf32>
    %136 = vector.multi_reduction <add>, %135, %cst_58 [1] : vector<8x32xf32> to vector<8xf32>
    %137 = vector.shape_cast %136 : vector<8xf32> to vector<8x1xf32>
    %cst_59 = arith.constant 3.200000e+01 : f32
    %138 = vector.broadcast %cst_59 : f32 to vector<8x1xf32>
    %139 = arith.divf %137, %138 : vector<8x1xf32>
    %140 = vector.broadcast %132 : vector<8x1xf32> to vector<8x32xf32>
    %141 = arith.subf %128, %140 : vector<8x32xf32>
    %cst_60 = arith.constant 9.99999974E-6 : f32
    %142 = vector.broadcast %cst_60 : f32 to vector<8x1xf32>
    %143 = arith.addf %139, %142 : vector<8x1xf32>
    %144 = math.rsqrt %143 : vector<8x1xf32>
    %145 = vector.broadcast %144 : vector<8x1xf32> to vector<8x32xf32>
    %146 = arith.mulf %141, %145 : vector<8x32xf32>
    %c12 = arith.constant 12 : index
    %c0_61 = arith.constant 0 : index
    %147 = vector.load %arg3[%c12, %c0_61] : memref<25x64xf32, #tpu.memory_space<vmem>>, vector<1x32xf32>
    %148 = vector.broadcast %147 : vector<1x32xf32> to vector<8x32xf32>
    %149 = arith.mulf %146, %148 : vector<8x32xf32>
    %c13 = arith.constant 13 : index
    %c0_62 = arith.constant 0 : index
    %150 = vector.load %arg3[%c13, %c0_62] : memref<25x64xf32, #tpu.memory_space<vmem>>, vector<1x32xf32>
    %151 = vector.broadcast %150 : vector<1x32xf32> to vector<8x32xf32>
    %152 = arith.addf %149, %151 : vector<8x32xf32>
    %c1_63 = arith.constant 1 : index
    %c0_64 = arith.constant 0 : index
    %c0_65 = arith.constant 0 : index
    %c0_66 = arith.constant 0 : index
    %153 = vector.load %arg7[%c1_63, %c0_64, %c0_65, %c0_66] : memref<3x1x8x32xf32, #tpu.memory_space<vmem>>, vector<1x1x8x32xf32>
    %154 = vector.shape_cast %153 : vector<1x1x8x32xf32> to vector<8x32xf32>
    %155 = vector.shape_cast %152 : vector<8x32xf32> to vector<1x1x8x32xf32>
    tpu.vector_store %arg7[%c1_63, %c0_64, %c0_65, %c0_66], %155 {strides = array<i32>} : memref<3x1x8x32xf32, #tpu.memory_space<vmem>>, vector<1x1x8x32xf32>,
    %156 = arith.truncf %152 : vector<8x32xf32> to vector<8x32xbf16>
    %157 = vector.shape_cast %156 : vector<8x32xbf16> to vector<1x8x32xbf16>
    %158 = vector.shape_cast %157 : vector<1x8x32xbf16> to vector<1x8x32xbf16>
    %159 = vector.broadcast %158 : vector<1x8x32xbf16> to vector<4x8x32xbf16>
    %c14 = arith.constant 14 : index
    %c0_67 = arith.constant 0 : index
    %160 = vector.load %arg3[%c14, %c0_67] : memref<25x64xf32, #tpu.memory_space<vmem>>, vector<4x24xf32>
    %c1_68 = arith.constant 1 : index
    %c0_69 = arith.constant 0 : index
    %c0_70 = arith.constant 0 : index
    %c0_71 = arith.constant 0 : index
    %161 = vector.load %arg4[%c1_68, %c0_69, %c0_70, %c0_71] : memref<2x4x32x24xbf16, #tpu.memory_space<vmem>>, vector<1x4x32x24xbf16>
    %162 = vector.shape_cast %161 : vector<1x4x32x24xbf16> to vector<4x32x24xbf16>
    "tpu.trace_start"() <{level = 10 : i32, message = "hsk,hkd->hsd"}> : () -> ()
    %cst_72 = arith.constant dense<0.000000e+00> : vector<4x8x24xf32>
    %163 = tpu.matmul %159, %162, %cst_72 {dimension_numbers = #tpu.dot_dimension_numbers<[2], [1], [1], [2], [0, 0, 0, 1, 1, 2], [0], [0]>} : vector<4x8x32xbf16>, vector<4x32x24xbf16>, vector<4x8x24xf32> -> vector<4x8x24xf32>
    "tpu.trace_stop"() : () -> ()
    %164 = vector.shape_cast %160 : vector<4x24xf32> to vector<4x1x24xf32>
    %165 = vector.broadcast %164 : vector<4x1x24xf32> to vector<4x8x24xf32>
    %166 = arith.addf %163, %165 : vector<4x8x24xf32>
    %167 = vector.extract_strided_slice %166 {offsets = [0, 0, 0], sizes = [4, 8, 8], strides = [1, 1, 1]} : vector<4x8x24xf32> to vector<4x8x8xf32>
    %168 = arith.truncf %167 : vector<4x8x8xf32> to vector<4x8x8xbf16>
    %169 = vector.extract_strided_slice %166 {offsets = [0, 0, 8], sizes = [4, 8, 8], strides = [1, 1, 1]} : vector<4x8x24xf32> to vector<4x8x8xf32>
    %170 = arith.truncf %169 : vector<4x8x8xf32> to vector<4x8x8xbf16>
    %171 = vector.extract_strided_slice %166 {offsets = [0, 0, 16], sizes = [4, 8, 8], strides = [1, 1, 1]} : vector<4x8x24xf32> to vector<4x8x8xf32>
    %172 = arith.truncf %171 : vector<4x8x8xf32> to vector<4x8x8xbf16>
    "tpu.trace_start"() <{level = 10 : i32, message = "hqd,hkd->hqk"}> : () -> ()
    %cst_73 = arith.constant dense<0.000000e+00> : vector<4x8x8xf32>
    %173 = tpu.matmul %168, %170, %cst_73 {dimension_numbers = #tpu.dot_dimension_numbers<[2], [2], [1], [1], [0, 0, 0, 1, 1, 1], [0], [0]>} : vector<4x8x8xbf16>, vector<4x8x8xbf16>, vector<4x8x8xf32> -> vector<4x8x8xf32>
    "tpu.trace_stop"() : () -> ()
    %cst_74 = arith.constant 0.353553385 : f32
    %174 = vector.broadcast %cst_74 : f32 to vector<4x8x8xf32>
    %175 = arith.mulf %173, %174 : vector<4x8x8xf32>
    %176 = vector.broadcast %33 : vector<1x1x8xf32> to vector<4x8x8xf32>
    %177 = arith.addf %175, %176 : vector<4x8x8xf32>
    %cst_75 = arith.constant dense<0xFF800000> : vector<4x8xf32>
    %178 = vector.multi_reduction <maximumf>, %177, %cst_75 [2] : vector<4x8x8xf32> to vector<4x8xf32>
    %179 = vector.shape_cast %178 : vector<4x8xf32> to vector<4x8x1xf32>
    %180 = vector.broadcast %179 : vector<4x8x1xf32> to vector<4x8x8xf32>
    %181 = arith.subf %177, %180 : vector<4x8x8xf32>
    %182 = math.exp %181 : vector<4x8x8xf32>
    %cst_76 = arith.constant dense<0.000000e+00> : vector<4x8xf32>
    %183 = vector.multi_reduction <add>, %182, %cst_76 [2] : vector<4x8x8xf32> to vector<4x8xf32>
    %184 = vector.shape_cast %183 : vector<4x8xf32> to vector<4x8x1xf32>
    %185 = tpu.reciprocal %184 {approx = true} : vector<4x8x1xf32> -> vector<4x8x1xf32>
    %186 = vector.broadcast %185 : vector<4x8x1xf32> to vector<4x8x8xf32>
    %187 = arith.mulf %182, %186 : vector<4x8x8xf32>
    %188 = arith.truncf %187 : vector<4x8x8xf32> to vector<4x8x8xbf16>
    "tpu.trace_start"() <{level = 10 : i32, message = "hqk,hkd->hqd"}> : () -> ()
    %cst_77 = arith.constant dense<0.000000e+00> : vector<4x8x8xf32>
    %189 = tpu.matmul %188, %172, %cst_77 {dimension_numbers = #tpu.dot_dimension_numbers<[2], [1], [1], [2], [0, 0, 0, 1, 1, 2], [0], [0]>} : vector<4x8x8xbf16>, vector<4x8x8xbf16>, vector<4x8x8xf32> -> vector<4x8x8xf32>
    "tpu.trace_stop"() : () -> ()
    %190 = arith.truncf %189 : vector<4x8x8xf32> to vector<4x8x8xbf16>
    %c1_78 = arith.constant 1 : index
    %c0_79 = arith.constant 0 : index
    %c0_80 = arith.constant 0 : index
    %c0_81 = arith.constant 0 : index
    %191 = vector.load %arg5[%c1_78, %c0_79, %c0_80, %c0_81] : memref<2x4x8x32xbf16, #tpu.memory_space<vmem>>, vector<1x4x8x32xbf16>
    %192 = vector.shape_cast %191 : vector<1x4x8x32xbf16> to vector<4x8x32xbf16>
    "tpu.trace_start"() <{level = 10 : i32, message = "hsd,hdn->hsn"}> : () -> ()
    %cst_82 = arith.constant dense<0.000000e+00> : vector<4x8x32xf32>
    %193 = tpu.matmul %190, %192, %cst_82 {dimension_numbers = #tpu.dot_dimension_numbers<[2], [1], [1], [2], [0, 0, 0, 1, 1, 2], [0], [0]>} : vector<4x8x8xbf16>, vector<4x8x32xbf16>, vector<4x8x32xf32> -> vector<4x8x32xf32>
    "tpu.trace_stop"() : () -> ()
    %cst_83 = arith.constant dense<0.000000e+00> : vector<8x32xf32>
    %194 = vector.multi_reduction <add>, %193, %cst_83 [0] : vector<4x8x32xf32> to vector<8x32xf32>
    %c18 = arith.constant 18 : index
    %c0_84 = arith.constant 0 : index
    %195 = vector.load %arg3[%c18, %c0_84] : memref<25x64xf32, #tpu.memory_space<vmem>>, vector<1x32xf32>
    %196 = vector.broadcast %195 : vector<1x32xf32> to vector<8x32xf32>
    %197 = arith.addf %194, %196 : vector<8x32xf32>
    %198 = arith.addf %197, %152 : vector<8x32xf32>
    %cst_85 = arith.constant dense<0.000000e+00> : vector<8xf32>
    %199 = vector.multi_reduction <add>, %198, %cst_85 [1] : vector<8x32xf32> to vector<8xf32>
    %200 = vector.shape_cast %199 : vector<8xf32> to vector<8x1xf32>
    %cst_86 = arith.constant 3.200000e+01 : f32
    %201 = vector.broadcast %cst_86 : f32 to vector<8x1xf32>
    %202 = arith.divf %200, %201 : vector<8x1xf32>
    %203 = vector.broadcast %202 : vector<8x1xf32> to vector<8x32xf32>
    %204 = arith.subf %198, %203 : vector<8x32xf32>
    %205 = arith.mulf %204, %204 : vector<8x32xf32>
    %cst_87 = arith.constant dense<0.000000e+00> : vector<8xf32>
    %206 = vector.multi_reduction <add>, %205, %cst_87 [1] : vector<8x32xf32> to vector<8xf32>
    %207 = vector.shape_cast %206 : vector<8xf32> to vector<8x1xf32>
    %cst_88 = arith.constant 3.200000e+01 : f32
    %208 = vector.broadcast %cst_88 : f32 to vector<8x1xf32>
    %209 = arith.divf %207, %208 : vector<8x1xf32>
    %210 = vector.broadcast %202 : vector<8x1xf32> to vector<8x32xf32>
    %211 = arith.subf %198, %210 : vector<8x32xf32>
    %cst_89 = arith.constant 9.99999974E-6 : f32
    %212 = vector.broadcast %cst_89 : f32 to vector<8x1xf32>
    %213 = arith.addf %209, %212 : vector<8x1xf32>
    %214 = math.rsqrt %213 : vector<8x1xf32>
    %215 = vector.broadcast %214 : vector<8x1xf32> to vector<8x32xf32>
    %216 = arith.mulf %211, %215 : vector<8x32xf32>
    %c19 = arith.constant 19 : index
    %c0_90 = arith.constant 0 : index
    %217 = vector.load %arg3[%c19, %c0_90] : memref<25x64xf32, #tpu.memory_space<vmem>>, vector<1x32xf32>
    %218 = vector.broadcast %217 : vector<1x32xf32> to vector<8x32xf32>
    %219 = arith.mulf %216, %218 : vector<8x32xf32>
    %c20 = arith.constant 20 : index
    %c0_91 = arith.constant 0 : index
    %220 = vector.load %arg3[%c20, %c0_91] : memref<25x64xf32, #tpu.memory_space<vmem>>, vector<1x32xf32>
    %221 = vector.broadcast %220 : vector<1x32xf32> to vector<8x32xf32>
    %222 = arith.addf %219, %221 : vector<8x32xf32>
    %c1_92 = arith.constant 1 : index
    %c0_93 = arith.constant 0 : index
    %c0_94 = arith.constant 0 : index
    %223 = vector.load %arg6[%c1_92, %c0_93, %c0_94] : memref<3x96x64xbf16, #tpu.memory_space<vmem>>, vector<1x32x64xbf16>
    %224 = vector.shape_cast %223 : vector<1x32x64xbf16> to vector<32x64xbf16>
    %c1_95 = arith.constant 1 : index
    %c32_96 = arith.constant 32 : index
    %c0_97 = arith.constant 0 : index
    %225 = vector.load %arg6[%c1_95, %c32_96, %c0_97] : memref<3x96x64xbf16, #tpu.memory_space<vmem>>, vector<1x64x32xbf16>
    %226 = vector.shape_cast %225 : vector<1x64x32xbf16> to vector<64x32xbf16>
    %c21 = arith.constant 21 : index
    %c0_98 = arith.constant 0 : index
    %227 = vector.load %arg3[%c21, %c0_98] : memref<25x64xf32, #tpu.memory_space<vmem>>, vector<1x64xf32>
    %228 = arith.truncf %222 : vector<8x32xf32> to vector<8x32xbf16>
    %cst_99 = arith.constant dense<0.000000e+00> : vector<8x64xf32>
    %229 = tpu.matmul %228, %224, %cst_99 {dimension_numbers = #tpu.dot_dimension_numbers<[1], [0], [0], [1], [0, 0, 1, 1], [], []>} : vector<8x32xbf16>, vector<32x64xbf16>, vector<8x64xf32> -> vector<8x64xf32>
    %230 = vector.broadcast %227 : vector<1x64xf32> to vector<8x64xf32>
    %231 = arith.addf %229, %230 : vector<8x64xf32>
    %232 = arith.mulf %231, %231 : vector<8x64xf32>
    %233 = arith.mulf %231, %232 : vector<8x64xf32>
    %cst_100 = arith.constant 4.471500e-02 : f32
    %234 = vector.broadcast %cst_100 : f32 to vector<8x64xf32>
    %235 = arith.mulf %234, %233 : vector<8x64xf32>
    %236 = arith.addf %231, %235 : vector<8x64xf32>
    %cst_101 = arith.constant 0.797884583 : f32
    %237 = vector.broadcast %cst_101 : f32 to vector<8x64xf32>
    %238 = arith.mulf %237, %236 : vector<8x64xf32>
    %239 = math.tanh %238 : vector<8x64xf32>
    %cst_102 = arith.constant 1.000000e+00 : f32
    %240 = vector.broadcast %cst_102 : f32 to vector<8x64xf32>
    %241 = arith.addf %240, %239 : vector<8x64xf32>
    %cst_103 = arith.constant 5.000000e-01 : f32
    %242 = vector.broadcast %cst_103 : f32 to vector<8x64xf32>
    %243 = arith.mulf %242, %241 : vector<8x64xf32>
    %244 = arith.mulf %231, %243 : vector<8x64xf32>
    %c22 = arith.constant 22 : index
    %c0_104 = arith.constant 0 : index
    %245 = vector.load %arg3[%c22, %c0_104] : memref<25x64xf32, #tpu.memory_space<vmem>>, vector<1x32xf32>
    %246 = arith.truncf %244 : vector<8x64xf32> to vector<8x64xbf16>
    %cst_105 = arith.constant dense<0.000000e+00> : vector<8x32xf32>
    %247 = tpu.matmul %246, %226, %cst_105 {dimension_numbers = #tpu.dot_dimension_numbers<[1], [0], [0], [1], [0, 0, 1, 1], [], []>} : vector<8x64xbf16>, vector<64x32xbf16>, vector<8x32xf32> -> vector<8x32xf32>
    %248 = vector.broadcast %245 : vector<1x32xf32> to vector<8x32xf32>
    %249 = arith.addf %247, %248 : vector<8x32xf32>
    %250 = arith.addf %249, %222 : vector<8x32xf32>
    %cst_106 = arith.constant dense<0.000000e+00> : vector<8xf32>
    %251 = vector.multi_reduction <add>, %250, %cst_106 [1] : vector<8x32xf32> to vector<8xf32>
    %252 = vector.shape_cast %251 : vector<8xf32> to vector<8x1xf32>
    %cst_107 = arith.constant 3.200000e+01 : f32
    %253 = vector.broadcast %cst_107 : f32 to vector<8x1xf32>
    %254 = arith.divf %252, %253 : vector<8x1xf32>
    %255 = vector.broadcast %254 : vector<8x1xf32> to vector<8x32xf32>
    %256 = arith.subf %250, %255 : vector<8x32xf32>
    %257 = arith.mulf %256, %256 : vector<8x32xf32>
    %cst_108 = arith.constant dense<0.000000e+00> : vector<8xf32>
    %258 = vector.multi_reduction <add>, %257, %cst_108 [1] : vector<8x32xf32> to vector<8xf32>
    %259 = vector.shape_cast %258 : vector<8xf32> to vector<8x1xf32>
    %cst_109 = arith.constant 3.200000e+01 : f32
    %260 = vector.broadcast %cst_109 : f32 to vector<8x1xf32>
    %261 = arith.divf %259, %260 : vector<8x1xf32>
    %262 = vector.broadcast %254 : vector<8x1xf32> to vector<8x32xf32>
    %263 = arith.subf %250, %262 : vector<8x32xf32>
    %cst_110 = arith.constant 9.99999974E-6 : f32
    %264 = vector.broadcast %cst_110 : f32 to vector<8x1xf32>
    %265 = arith.addf %261, %264 : vector<8x1xf32>
    %266 = math.rsqrt %265 : vector<8x1xf32>
    %267 = vector.broadcast %266 : vector<8x1xf32> to vector<8x32xf32>
    %268 = arith.mulf %263, %267 : vector<8x32xf32>
    %c23 = arith.constant 23 : index
    %c0_111 = arith.constant 0 : index
    %269 = vector.load %arg3[%c23, %c0_111] : memref<25x64xf32, #tpu.memory_space<vmem>>, vector<1x32xf32>
    %270 = vector.broadcast %269 : vector<1x32xf32> to vector<8x32xf32>
    %271 = arith.mulf %268, %270 : vector<8x32xf32>
    %c24 = arith.constant 24 : index
    %c0_112 = arith.constant 0 : index
    %272 = vector.load %arg3[%c24, %c0_112] : memref<25x64xf32, #tpu.memory_space<vmem>>, vector<1x32xf32>
    %273 = vector.broadcast %272 : vector<1x32xf32> to vector<8x32xf32>
    %274 = arith.addf %271, %273 : vector<8x32xf32>
    %c2 = arith.constant 2 : index
    %c0_113 = arith.constant 0 : index
    %c0_114 = arith.constant 0 : index
    %c0_115 = arith.constant 0 : index
    %275 = vector.load %arg7[%c2, %c0_113, %c0_114, %c0_115] : memref<3x1x8x32xf32, #tpu.memory_space<vmem>>, vector<1x1x8x32xf32>
    %276 = vector.shape_cast %275 : vector<1x1x8x32xf32> to vector<8x32xf32>
    %277 = vector.shape_cast %274 : vector<8x32xf32> to vector<1x1x8x32xf32>
    tpu.vector_store %arg7[%c2, %c0_113, %c0_114, %c0_115], %277 {strides = array<i32>} : memref<3x1x8x32xf32, #tpu.memory_space<vmem>>, vector<1x1x8x32xf32>,
    %c2_116 = arith.constant 2 : index
    %c0_117 = arith.constant 0 : index
    %c0_118 = arith.constant 0 : index
    %278 = vector.load %arg6[%c2_116, %c0_117, %c0_118] : memref<3x96x64xbf16, #tpu.memory_space<vmem>>, vector<1x32x32xbf16>
    %279 = vector.shape_cast %278 : vector<1x32x32xbf16> to vector<32x32xbf16>
    %280 = vector.extract_strided_slice %274 {offsets = [0, 0], sizes = [1, 32], strides = [1, 1]} : vector<8x32xf32> to vector<1x32xf32>
    %c2_119 = arith.constant 2 : index
    %c0_120 = arith.constant 0 : index
    %281 = vector.load %arg3[%c2_119, %c0_120] : memref<25x64xf32, #tpu.memory_space<vmem>>, vector<1x32xf32>
    %282 = arith.truncf %280 : vector<1x32xf32> to vector<1x32xbf16>
    %cst_121 = arith.constant dense<0.000000e+00> : vector<1x32xf32>
    %283 = tpu.matmul %282, %279, %cst_121 {dimension_numbers = #tpu.dot_dimension_numbers<[1], [0], [0], [1], [0, 0, 1, 1], [], []>} : vector<1x32xbf16>, vector<32x32xbf16>, vector<1x32xf32> -> vector<1x32xf32>
    %284 = arith.addf %283, %281 : vector<1x32xf32>
    %285 = math.tanh %284 : vector<1x32xf32>
    %c0_122 = arith.constant 0 : index
    %c0_123 = arith.constant 0 : index
    %c0_124 = arith.constant 0 : index
    %286 = vector.load %arg8[%c0_122, %c0_123, %c0_124] : memref<1x1x32xf32, #tpu.memory_space<vmem>>, vector<1x1x32xf32>
    %287 = vector.shape_cast %286 : vector<1x1x32xf32> to vector<1x32xf32>
    %288 = vector.shape_cast %285 : vector<1x32xf32> to vector<1x1x32xf32>
    tpu.vector_store %arg8[%c0_122, %c0_123, %c0_124], %288 {strides = array<i32>} : memref<1x1x32xf32, #tpu.memory_space<vmem>>, vector<1x1x32xf32>,
    return
  }
  func.func @transform_0(%arg0: i32) -> (i32, i32, i32) {
    %c0_i32 = arith.constant 0 : i32
    %c0_i32_0 = arith.constant 0 : i32
    %c0_i32_1 = arith.constant 0 : i32
    return %arg0, %c0_i32, %c0_i32_0 : i32, i32, i32
  }
  func.func @transform_1(%arg0: i32) -> (i32, i32, i32) {
    %c0_i32 = arith.constant 0 : i32
    %c0_i32_0 = arith.constant 0 : i32
    %c0_i32_1 = arith.constant 0 : i32
    return %arg0, %c0_i32, %c0_i32_0 : i32, i32, i32
  }
  func.func @transform_2(%arg0: i32) -> (i32, i32) {
    %c0_i32 = arith.constant 0 : i32
    %c0_i32_0 = arith.constant 0 : i32
    %c0_i32_1 = arith.constant 0 : i32
    return %c0_i32, %c0_i32_0 : i32, i32
  }
  func.func @transform_3(%arg0: i32) -> (i32, i32, i32, i32) {
    %c0_i32 = arith.constant 0 : i32
    %c0_i32_0 = arith.constant 0 : i32
    %c0_i32_1 = arith.constant 0 : i32
    %c0_i32_2 = arith.constant 0 : i32
    %c0_i32_3 = arith.constant 0 : i32
    return %c0_i32, %c0_i32_0, %c0_i32_1, %c0_i32_2 : i32, i32, i32, i32
  }
  func.func @transform_4(%arg0: i32) -> (i32, i32, i32, i32) {
    %c0_i32 = arith.constant 0 : i32
    %c0_i32_0 = arith.constant 0 : i32
    %c0_i32_1 = arith.constant 0 : i32
    %c0_i32_2 = arith.constant 0 : i32
    %c0_i32_3 = arith.constant 0 : i32
    return %c0_i32, %c0_i32_0, %c0_i32_1, %c0_i32_2 : i32, i32, i32, i32
  }
  func.func @transform_5(%arg0: i32) -> (i32, i32, i32) {
    %c0_i32 = arith.constant 0 : i32
    %c0_i32_0 = arith.constant 0 : i32
    %c0_i32_1 = arith.constant 0 : i32
    %c0_i32_2 = arith.constant 0 : i32
    return %c0_i32, %c0_i32_0, %c0_i32_1 : i32, i32, i32
  }
  func.func @transform_6(%arg0: i32) -> (i32, i32, i32, i32) {
    %c0_i32 = arith.constant 0 : i32
    %c0_i32_0 = arith.constant 0 : i32
    %c0_i32_1 = arith.constant 0 : i32
    %c0_i32_2 = arith.constant 0 : i32
    return %c0_i32, %arg0, %c0_i32_0, %c0_i32_1 : i32, i32, i32, i32
  }
  func.func @transform_7(%arg0: i32) -> (i32, i32, i32) {
    %c0_i32 = arith.constant 0 : i32
    %c0_i32_0 = arith.constant 0 : i32
    %c0_i32_1 = arith.constant 0 : i32
    return %arg0, %c0_i32, %c0_i32_0 : i32, i32, i32
  }
}

</mosaic_0001>

<llo_original>
// kernel: pretrained_embedder_forward.1
$region0: #{pretrained_embedder_forward.1}
  #allocation0 [shape = 'u32[]', space=smem, size = 0x4, offset = 0x4, fixed_abs, tag = 'smem constant byte address 0x4 - core index']
  #allocation1 [shape = 'u32[72,128]{1,0:T(1,128)}', space=vmem, size = 0x9000, scoped, tag = 'internal scratch']
  %s0 = inlined_call_operand.vmem [shape: f32[2,8,32], index: 0, kind: input, shape index: {}]
  %s1 = inlined_call_operand.vmem [shape: f32[2,1,8], index: 1, kind: input, shape index: {}]
  %s2 = inlined_call_operand.vmem [shape: f32[25,64], index: 2, kind: input, shape index: {}]
  %s3 = inlined_call_operand.vmem [shape: bf16[2,4,32,24], index: 3, kind: input, shape index: {}]
  %s4 = inlined_call_operand.vmem [shape: bf16[2,4,8,32], index: 4, kind: input, shape index: {}]
  %s5 = inlined_call_operand.vmem [shape: bf16[3,96,64], index: 5, kind: input, shape index: {}]
  %s6 = inlined_call_operand.vmem [shape: f32[3,2,8,32], index: 6, kind: output, shape index: {0}]
  %s7 = inlined_call_operand.hbm [shape: f32[2,1,32], index: 7, kind: output, shape index: {1}]
  %8 = xla_tuple %s6, %s7
  %s9 = sld [smem:[#allocation0]]
  $region99: #{pretrained_embedder_forward.1} parent=0
    _
  %s11 = ssub.s32 1, %s9
  %s12 = scalar_select 0, %s11, %s9
  $region1: #{pretrained_embedder_forward.1} parent=0
    #allocation2 [shape = 'u8[24576]{0}', space=vmem, size = 0x6000, scoped, tag = 'output window, operand 0']
    #allocation3 [shape = 'u8[1024]{0}', space=vmem, size = 0x400, scoped, tag = 'output window, operand 1']
    #allocation4 [shape = 's32[2]{0}', space=sflag, size = 0x8, scoped, tag = 'scoped memory for pretrained_embedder_forward.1']
    %13 = vsyncpa [#allocation4], 0
    %s14 = scalar_lea.sflag [#allocation4], 1
    %15 = vsyncpa %s14, 0
    loop: start=0, step=1, limit=4
    $region2: #{pretrained_embedder_forward.1} parent=1 // loop_pre_header
      _
    $region3: #{pretrained_embedder_forward.1} parent=1 // loop_header
      %s17 = sphi 0, %s21
      %p18 = scmp.ge.s32.totalorder %s17, 4
      %s27 = sphi 0, %s29
      %s30 = sphi 0, %s27
      %s31 = sphi 0, %s30
      %s47 = sphi 0, %s31
      %s53 = sphi 0, %s55
      %s56 = sphi 0, %s53
      %s57 = sphi 0, %s56
      %s73 = sphi 0, %s57
      %s77 = sphi 0, %s77
      %s79 = sphi 0, %s77
      %s80 = sphi 0, %s79
      %s94 = sphi 0, %s80
      %s98 = sphi 0, %s98
      %s100 = sphi 0, %s98
      %s101 = sphi 0, %s100
      %s115 = sphi 0, %s101
      %s119 = sphi 0, %s119
      %s121 = sphi 0, %s119
      %s122 = sphi 0, %s121
      %s136 = sphi 0, %s122
      %s140 = sphi 0, %s140
      %s142 = sphi 0, %s140
      %s143 = sphi 0, %s142
      %s157 = sphi 0, %s143
      %s163 = sphi 0, %s165
      %s166 = sphi 0, %s163
      %s167 = sphi 0, %s166
      %s183 = sphi 0, %s167
      %s189 = sphi 0, %s191
      %s192 = sphi 0, %s189
      %s193 = sphi 0, %s192
      %s209 = sphi 0, %s193
    $region4: #{pretrained_embedder_forward.1} parent=1 // loop_header_branch
      %20 = sbr.rel (%p18) target = $region8
    $region5: #{pretrained_embedder_forward.1} parent=1 // loop_body
      %s22 = ssub.s32 %s17, 1
      %s23 = ssub.s32 %s17, 2
      %s24 = sadd.s32 %s17, 1
      %s25 = ssub.s32 %s17, %s24
      %p26 = scmp.eq.s32.totalorder %s25, 0
      %s28 = sadd.s32 %s27, 1
      %s29 = scalar_select %p26, %s27, %s28
      %p32 = pneg %p26
      %p33 = scmp.eq.s32.totalorder %s17, 1
      %p34 = por %p32, %p33
      %p35 = scmp.ne.s32.totalorder %s27, %s30
      %p36 = scmp.eq.s32.totalorder %s17, 0
      %p37 = por %p35, %p36
      %p38 = scmp.ne.s32.totalorder %s27, %s30
      %p39 = scmp.eq.s32.totalorder %s22, 1
      %p40 = por %p38, %p39
      %p41 = scmp.ne.s32.totalorder %s30, %s31
      %p42 = scmp.eq.s32.totalorder %s22, 0
      %p43 = por %p41, %p42
      %p44 = scmp.ne.s32.totalorder %s30, %s31
      %p45 = scmp.eq.s32.totalorder %s23, 1
      %p46 = por %p44, %p45
      %p48 = scmp.ne.s32.totalorder %s31, %s47
      %p49 = scmp.eq.s32.totalorder %s23, 0
      %p50 = por %p48, %p49
      %s51 = ssub.s32 %s17, %s24
      %p52 = scmp.eq.s32.totalorder %s51, 0
      %s54 = sadd.s32 %s53, 1
      %s55 = scalar_select %p52, %s53, %s54
      %p58 = pneg %p52
      %p59 = scmp.eq.s32.totalorder %s17, 1
      %p60 = por %p58, %p59
      %p61 = scmp.ne.s32.totalorder %s53, %s56
      %p62 = scmp.eq.s32.totalorder %s17, 0
      %p63 = por %p61, %p62
      %p64 = scmp.ne.s32.totalorder %s53, %s56
      %p65 = scmp.eq.s32.totalorder %s22, 1
      %p66 = por %p64, %p65
      %p67 = scmp.ne.s32.totalorder %s56, %s57
      %p68 = scmp.eq.s32.totalorder %s22, 0
      %p69 = por %p67, %p68
      %p70 = scmp.ne.s32.totalorder %s56, %s57
      %p71 = scmp.eq.s32.totalorder %s23, 1
      %p72 = por %p70, %p71
      %p74 = scmp.ne.s32.totalorder %s57, %s73
      %p75 = scmp.eq.s32.totalorder %s23, 0
      %p76 = por %p74, %p75
      %s78 = sadd.s32 %s77, 1
      %p81 = scmp.eq.s32.totalorder %s17, 1
      %p82 = scmp.ne.s32.totalorder %s77, %s79
      %p83 = scmp.eq.s32.totalorder %s17, 0
      %p84 = por %p82, %p83
      %p85 = scmp.ne.s32.totalorder %s77, %s79
      %p86 = scmp.eq.s32.totalorder %s22, 1
      %p87 = por %p85, %p86
      %p88 = scmp.ne.s32.totalorder %s79, %s80
      %p89 = scmp.eq.s32.totalorder %s22, 0
      %p90 = por %p88, %p89
      %p91 = scmp.ne.s32.totalorder %s79, %s80
      %p92 = scmp.eq.s32.totalorder %s23, 1
      %p93 = por %p91, %p92
      %p95 = scmp.ne.s32.totalorder %s80, %s94
      %p96 = scmp.eq.s32.totalorder %s23, 0
      %p97 = por %p95, %p96
      %s99 = sadd.s32 %s98, 1
      %p102 = scmp.eq.s32.totalorder %s17, 1
      %p103 = scmp.ne.s32.totalorder %s98, %s100
      %p104 = scmp.eq.s32.totalorder %s17, 0
      %p105 = por %p103, %p104
      %p106 = scmp.ne.s32.totalorder %s98, %s100
      %p107 = scmp.eq.s32.totalorder %s22, 1
      %p108 = por %p106, %p107
      %p109 = scmp.ne.s32.totalorder %s100, %s101
      %p110 = scmp.eq.s32.totalorder %s22, 0
      %p111 = por %p109, %p110
      %p112 = scmp.ne.s32.totalorder %s100, %s101
      %p113 = scmp.eq.s32.totalorder %s23, 1
      %p114 = por %p112, %p113
      %p116 = scmp.ne.s32.totalorder %s101, %s115
      %p117 = scmp.eq.s32.totalorder %s23, 0
      %p118 = por %p116, %p117
      %s120 = sadd.s32 %s119, 1
      %p123 = scmp.eq.s32.totalorder %s17, 1
      %p124 = scmp.ne.s32.totalorder %s119, %s121
      %p125 = scmp.eq.s32.totalorder %s17, 0
      %p126 = por %p124, %p125
      %p127 = scmp.ne.s32.totalorder %s119, %s121
      %p128 = scmp.eq.s32.totalorder %s22, 1
      %p129 = por %p127, %p128
      %p130 = scmp.ne.s32.totalorder %s121, %s122
      %p131 = scmp.eq.s32.totalorder %s22, 0
      %p132 = por %p130, %p131
      %p133 = scmp.ne.s32.totalorder %s121, %s122
      %p134 = scmp.eq.s32.totalorder %s23, 1
      %p135 = por %p133, %p134
      %p137 = scmp.ne.s32.totalorder %s122, %s136
      %p138 = scmp.eq.s32.totalorder %s23, 0
      %p139 = por %p137, %p138
      %s141 = sadd.s32 %s140, 1
      %p144 = scmp.eq.s32.totalorder %s17, 1
      %p145 = scmp.ne.s32.totalorder %s140, %s142
      %p146 = scmp.eq.s32.totalorder %s17, 0
      %p147 = por %p145, %p146
      %p148 = scmp.ne.s32.totalorder %s140, %s142
      %p149 = scmp.eq.s32.totalorder %s22, 1
      %p150 = por %p148, %p149
      %p151 = scmp.ne.s32.totalorder %s142, %s143
      %p152 = scmp.eq.s32.totalorder %s22, 0
      %p153 = por %p151, %p152
      %p154 = scmp.ne.s32.totalorder %s142, %s143
      %p155 = scmp.eq.s32.totalorder %s23, 1
      %p156 = por %p154, %p155
      %p158 = scmp.ne.s32.totalorder %s143, %s157
      %p159 = scmp.eq.s32.totalorder %s23, 0
      %p160 = por %p158, %p159
      %s161 = ssub.s32 %s17, %s24
      %p162 = scmp.eq.s32.totalorder %s161, 0
      %s164 = sadd.s32 %s163, 1
      %s165 = scalar_select %p162, %s163, %s164
      %p168 = pneg %p162
      %p169 = scmp.eq.s32.totalorder %s17, 1
      %p170 = por %p168, %p169
      %p171 = scmp.ne.s32.totalorder %s163, %s166
      %p172 = scmp.eq.s32.totalorder %s17, 0
      %p173 = por %p171, %p172
      %p174 = scmp.ne.s32.totalorder %s163, %s166
      %p175 = scmp.eq.s32.totalorder %s22, 1
      %p176 = por %p174, %p175
      %p177 = scmp.ne.s32.totalorder %s166, %s167
      %p178 = scmp.eq.s32.totalorder %s22, 0
      %p179 = por %p177, %p178
      %p180 = scmp.ne.s32.totalorder %s166, %s167
      %p181 = scmp.eq.s32.totalorder %s23, 1
      %p182 = por %p180, %p181
      %p184 = scmp.ne.s32.totalorder %s167, %s183
      %p185 = scmp.eq.s32.totalorder %s23, 0
      %p186 = por %p184, %p185
      %s187 = ssub.s32 %s17, %s24
      %p188 = scmp.eq.s32.totalorder %s187, 0
      %s190 = sadd.s32 %s189, 1
      %s191 = scalar_select %p188, %s189, %s190
      %p194 = pneg %p188
      %p195 = scmp.eq.s32.totalorder %s17, 1
      %p196 = por %p194, %p195
      %p197 = scmp.ne.s32.totalorder %s189, %s192
      %p198 = scmp.eq.s32.totalorder %s17, 0
      %p199 = por %p197, %p198
      %p200 = scmp.ne.s32.totalorder %s189, %s192
      %p201 = scmp.eq.s32.totalorder %s22, 1
      %p202 = por %p200, %p201
      %p203 = scmp.ne.s32.totalorder %s192, %s193
      %p204 = scmp.eq.s32.totalorder %s22, 0
      %p205 = por %p203, %p204
      %p206 = scmp.ne.s32.totalorder %s192, %s193
      %p207 = scmp.eq.s32.totalorder %s23, 1
      %p208 = por %p206, %p207
      %p210 = scmp.ne.s32.totalorder %s193, %s209
      %p211 = scmp.eq.s32.totalorder %s23, 0
      %p212 = por %p210, %p211
      %p213 = scmp.le.s32.totalorder 1, %s17
      %p214 = scmp.lt.s32.totalorder %s17, 3
      %p215 = pnand %p213, %p214
      %p216 = pneg %p215
      // Predicated region
      $region9: #{pretrained_embedder_forward.1} parent=5 // pred_check
        _
      $region10: #{pretrained_embedder_forward.1} parent=5 // pred_check_branch
        %218 = sbr.rel (%p215) target = $region12
      $region11: #{pretrained_embedder_forward.1} parent=5 // pred_region
        %s219 = ssub.s32 %s17, 1
        // Predicated region
        $region13: #{pretrained_embedder_forward.1} parent=11 // pred_check
          %p220 = pneg %p90
        $region14: #{pretrained_embedder_forward.1} parent=11 // pred_check_branch
          %222 = sbr.rel (%p220) target = $region16
        $region15: #{pretrained_embedder_forward.1} parent=11 // pred_region
          _
        $region16: #{pretrained_embedder_forward.1} parent=11 // pred_fallthru
          _
        // Predicated region
        $region17: #{pretrained_embedder_forward.1} parent=11 // pred_check
          %p223 = pneg %p111
        $region18: #{pretrained_embedder_forward.1} parent=11 // pred_check_branch
          %225 = sbr.rel (%p223) target = $region20
        $region19: #{pretrained_embedder_forward.1} parent=11 // pred_region
          _
        $region20: #{pretrained_embedder_forward.1} parent=11 // pred_fallthru
          _
        // Predicated region
        $region21: #{pretrained_embedder_forward.1} parent=11 // pred_check
          %p226 = pneg %p132
        $region22: #{pretrained_embedder_forward.1} parent=11 // pred_check_branch
          %228 = sbr.rel (%p226) target = $region24
        $region23: #{pretrained_embedder_forward.1} parent=11 // pred_region
          _
        $region24: #{pretrained_embedder_forward.1} parent=11 // pred_fallthru
          _
        // Predicated region
        $region25: #{pretrained_embedder_forward.1} parent=11 // pred_check
          %p229 = pneg %p153
        $region26: #{pretrained_embedder_forward.1} parent=11 // pred_check_branch
          %231 = sbr.rel (%p229) target = $region28
        $region27: #{pretrained_embedder_forward.1} parent=11 // pred_region
          _
        $region28: #{pretrained_embedder_forward.1} parent=11 // pred_fallthru
          _
      $region12: #{pretrained_embedder_forward.1} parent=5 // pred_fallthru
        _
      %p232 = scmp.lt.s32.totalorder %s17, 2
      // Predicated region
      $region29: #{pretrained_embedder_forward.1} parent=5 // pred_check
        %p233 = pneg %p232
      $region30: #{pretrained_embedder_forward.1} parent=5 // pred_check_branch
        %235 = sbr.rel (%p233) target = $region32
      $region31: #{pretrained_embedder_forward.1} parent=5 // pred_region
        // Predicated region
        $region33: #{pretrained_embedder_forward.1} parent=31 // pred_check
          %p236 = pneg %p37
        $region34: #{pretrained_embedder_forward.1} parent=31 // pred_check_branch
          %238 = sbr.rel (%p236) target = $region36
        $region35: #{pretrained_embedder_forward.1} parent=31 // pred_region
          %p239 = scmp.lt.s32.totalorder %s17, 1
          %s240 = scalar_select %p239, %s17, 1
          %s241 = smul.addr %s240, 8
          %s242 = scalar_lea.vmem %s0, %s241
        $region36: #{pretrained_embedder_forward.1} parent=31 // pred_fallthru
          _
        // Predicated region
        $region37: #{pretrained_embedder_forward.1} parent=31 // pred_check
          %p243 = pneg %p63
        $region38: #{pretrained_embedder_forward.1} parent=31 // pred_check_branch
          %245 = sbr.rel (%p243) target = $region40
        $region39: #{pretrained_embedder_forward.1} parent=31 // pred_region
          %p246 = scmp.lt.s32.totalorder %s17, 1
          %s247 = scalar_select %p246, %s17, 1
          %s248 = scalar_lea.vmem %s1, %s247
        $region40: #{pretrained_embedder_forward.1} parent=31 // pred_fallthru
          _
      $region32: #{pretrained_embedder_forward.1} parent=5 // pred_fallthru
        _
      %p249 = scmp.le.s32.totalorder 1, %s17
      %p250 = scmp.lt.s32.totalorder %s17, 3
      %p251 = pnand %p249, %p250
      %p252 = pneg %p251
      // Predicated region
      $region41: #{pretrained_embedder_forward.1} parent=5 // pred_check
        _
      $region42: #{pretrained_embedder_forward.1} parent=5 // pred_check_branch
        %254 = sbr.rel (%p251) target = $region44
      $region43: #{pretrained_embedder_forward.1} parent=5 // pred_region
        %s255 = ssub.s32 %s17, 1
        %p256 = scmp.lt.s32.totalorder %s22, 1
        %s257 = scalar_select %p256, %s22, 1
        %s258 = smul.addr %s257, 8
        %s259 = scalar_lea.vmem %s0, %s258
        %p260 = pneg %p43
        %p261 = pneg %p40
        %p262 = scmp.lt.s32.totalorder %s22, 1
        %s263 = scalar_select %p262, %s22, 1
        %s264 = scalar_lea.vmem %s1, %s263
        %p265 = pneg %p69
        %p266 = pneg %p66
        %p267 = pneg %p90
        %p268 = pneg %p87
        %p269 = pneg %p111
        %p270 = pneg %p108
        %p271 = pneg %p132
        %p272 = pneg %p129
        %p273 = pneg %p153
        %p274 = pneg %p150
        %p275 = pneg %p179
        %p276 = pneg %p176
        %s277 = sand.u32 %s166, 1
        %s278 = sand.u32 %s166, 1
        %s279 = smul.addr %s278, 24
        %s280 = scalar_lea.vmem [#allocation2], %s279
        %p281 = pneg %p205
        %p282 = pneg %p202
        %s283 = sand.u32 %s192, 1
        %s284 = scalar_lea.sflag [#allocation4], %s283
        %s285 = sand.u32 %s192, 1
        %s286 = scalar_lea.vmem [#allocation3], %s285
        %p287 = scmp.lt.s32.totalorder %s22, 1
        %s288 = scalar_select %p287, %s22, 1
        %s289 = smul.addr %s288, 8
        %s290 = scalar_lea.vmem %s0, %s289
        %p291 = scmp.lt.s32.totalorder %s22, 1
        %s292 = scalar_select %p291, %s22, 1
        %s293 = scalar_lea.vmem %s1, %s292
        %v295 = vld [vmem:[%s290] sm:$0xff]
        %vm296 = vcmask 261120
        %v297 = vsel %vm296, %v295, 0.0
        %298 = vadd.xlane.f32.xlu0 %v297
        %v299 = vpop.xlane.xlu0 %298
        %v300 = vrcp.pop 32.0
        %v301 = vmul.f32 32.0, %v300
        %v302 = vsub.f32 1.0, %v301
        %v303 = vmul.f32 %v300, %v302
        %v304 = vadd.f32 %v300, %v303
        %vm305 = vweird.f32 %v300
        %v306 = vsel %vm305, %v300, %v304
        %v307 = vmul.f32 %v299, %v306
        %v308 = vsub.f32 %v295, %v307
        %v309 = vmul.f32 %v308, %v308
        %v310 = vsel %vm296, %v309, 0.0
        %311 = vadd.xlane.f32.xlu0 %v310
        %v312 = vpop.xlane.xlu0 %311
        %v313 = vmul.f32 %v312, %v306
        %v314 = vadd.f32 %v313, 1e-05
        %v315 = vrsqrt.pop %v314
        %v316 = vmul.f32 %v315, %v314
        %v317 = vmul.f32 %v316, %v315
        %v318 = vmul.f32 0.5, %v317
        %v319 = vsub.f32 1.5, %v318
        %v320 = vmul.f32 %v315, %v319
        %vm321 = vweird.f32 %v314
        %vm322 = vweird.f32 %v315
        %vm323 = vmor %vm321, %vm322
        %v324 = vsel %vm323, %v315, %v320
        %v325 = vmul.f32 %v308, %v324
        %v326 = vld [vmem:[%s2] sm:$0x1]
        %v327 = vperm.slane %v326, 0
        %v328 = vmul.f32 %v325, %v327
        %v329 = vld [vmem:[%s2 + $0x1] sm:$0x1]
        %v330 = vperm.slane %v329, 0
        %v331 = vadd.f32 %v328, %v330
        %332 = vst.msk [vmem:[%s280] sm:$0xff] %vm296, %v331
        %v333 = vld [vmem:[%s293] sm:$0x1]
        %v334 = vsub.f32 1.0, %v333
        %v335 = vmul.f32 %v334, -1e+09
        %v336 = vpack.c.bf16 %v331, %v331
        %v337 = vld [vmem:[%s2 + $0x3] sm:$0xf]
        %v338 = vld [vmem:[%s3] sm:$0xf]
        %v339 = vld [vmem:[%s3 + $0x4] sm:$0xf]
        %v340 = vld [vmem:[%s3 + $0x8] sm:$0xf]
        %v341 = vld [vmem:[%s3 + $0xc] sm:$0xf]
        %v342 = vld [vmem:[%s3 + $0x10] sm:$0xf]
        %v343 = vld [vmem:[%s3 + $0x14] sm:$0xf]
        %v344 = vld [vmem:[%s3 + $0x18] sm:$0xf]
        %v345 = vld [vmem:[%s3 + $0x1c] sm:$0xf]
        %v346 = vld [vmem:[%s3 + $0x20] sm:$0xf]
        %v347 = vld [vmem:[%s3 + $0x24] sm:$0xf]
        %v348 = vld [vmem:[%s3 + $0x28] sm:$0xf]
        %v349 = vld [vmem:[%s3 + $0x2c] sm:$0xf]
        %v350 = vld [vmem:[%s3 + $0x30] sm:$0xf]
        %v351 = vld [vmem:[%s3 + $0x34] sm:$0xf]
        %v352 = vld [vmem:[%s3 + $0x38] sm:$0xf]
        %v353 = vld [vmem:[%s3 + $0x3c] sm:$0xf]
        %v355 = vrot.slane %v337, 1
        %v356 = vrot.slane %v337, 2
        %v357 = vrot.slane %v337, 3
        %v358 = vperm.slane %v337, 0
        %v359 = vperm.slane %v355, 0
        %v360 = vperm.slane %v356, 0
        %v361 = vperm.slane %v357, 0
        %v370 = vunpack.c.l.b16 %v338
        %v371 = vunpack.c.l.b16 %v339
        %v372 = vunpack.c.l.b16 %v340
        %v373 = vunpack.c.l.b16 %v341
        %v374 = vpack.c.b16 %v371, %v370
        %v375 = vpack.c.b16 %v373, %v372
        %v379 = vsel %vm296, %v336, 0
        %381 = vmatpush.bf16.msra.mxu0 0
        %382 = vmatpush.bf16.msra.mxu0 0
        %383 = vmatpush.bf16.msra.mxu0 0
        %384 = vmatpush.bf16.msra.mxu0 0
        %385 = vmatpush.bf16.msra.mxu0 0
        %386 = vmatpush.bf16.msra.mxu0 0
        %387 = vmatpush.bf16.msra.mxu0 %v375
        %388 = vmatpush.bf16.msra.mxu0 %v374
        %389 = vmatmul.bf16.gmra.mxu0 %v379
        %v390 = vpop.f32.mrf.mxu0
        %v391 = vadd.f32 %v358, %v390
        %v392 = vpop.f32.mrf.mxu0
        %393 = vdwg.mxu0
        %v398 = vunpack.c.l.b16 %v342
        %v399 = vunpack.c.l.b16 %v343
        %v400 = vunpack.c.l.b16 %v344
        %v401 = vunpack.c.l.b16 %v345
        %v402 = vpack.c.b16 %v399, %v398
        %v403 = vpack.c.b16 %v401, %v400
        %406 = vmatpush.bf16.msra.mxu0 0
        %407 = vmatpush.bf16.msra.mxu0 0
        %408 = vmatpush.bf16.msra.mxu0 0
        %409 = vmatpush.bf16.msra.mxu0 0
        %410 = vmatpush.bf16.msra.mxu0 0
        %411 = vmatpush.bf16.msra.mxu0 0
        %412 = vmatpush.bf16.msra.mxu0 %v403
        %413 = vmatpush.bf16.msra.mxu0 %v402
        %414 = vmatmul.bf16.gmra.mxu0 %v379
        %v415 = vpop.f32.mrf.mxu0
        %v416 = vadd.f32 %v359, %v415
        %v417 = vpop.f32.mrf.mxu0
        %418 = vdwg.mxu0
        %v423 = vunpack.c.l.b16 %v346
        %v424 = vunpack.c.l.b16 %v347
        %v425 = vunpack.c.l.b16 %v348
        %v426 = vunpack.c.l.b16 %v349
        %v427 = vpack.c.b16 %v424, %v423
        %v428 = vpack.c.b16 %v426, %v425
        %431 = vmatpush.bf16.msra.mxu0 0
        %432 = vmatpush.bf16.msra.mxu0 0
        %433 = vmatpush.bf16.msra.mxu0 0
        %434 = vmatpush.bf16.msra.mxu0 0
        %435 = vmatpush.bf16.msra.mxu0 0
        %436 = vmatpush.bf16.msra.mxu0 0
        %437 = vmatpush.bf16.msra.mxu0 %v428
        %438 = vmatpush.bf16.msra.mxu0 %v427
        %439 = vmatmul.bf16.gmra.mxu0 %v379
        %v440 = vpop.f32.mrf.mxu0
        %v441 = vadd.f32 %v360, %v440
        %v442 = vpop.f32.mrf.mxu0
        %443 = vdwg.mxu0
        %v448 = vunpack.c.l.b16 %v350
        %v449 = vunpack.c.l.b16 %v351
        %v450 = vunpack.c.l.b16 %v352
        %v451 = vunpack.c.l.b16 %v353
        %v452 = vpack.c.b16 %v449, %v448
        %v453 = vpack.c.b16 %v451, %v450
        %456 = vmatpush.bf16.msra.mxu0 0
        %457 = vmatpush.bf16.msra.mxu0 0
        %458 = vmatpush.bf16.msra.mxu0 0
        %459 = vmatpush.bf16.msra.mxu0 0
        %460 = vmatpush.bf16.msra.mxu0 0
        %461 = vmatpush.bf16.msra.mxu0 0
        %462 = vmatpush.bf16.msra.mxu0 %v453
        %463 = vmatpush.bf16.msra.mxu0 %v452
        %464 = vmatmul.bf16.gmra.mxu0 %v379
        %v465 = vpop.f32.mrf.mxu0
        %v466 = vadd.f32 %v361, %v465
        %v467 = vpop.f32.mrf.mxu0
        %468 = vdwg.mxu0
        %v469 = vpack.c.bf16 %v391, %v391
        %v470 = vpack.c.bf16 %v416, %v416
        %v471 = vpack.c.bf16 %v441, %v441
        %v472 = vpack.c.bf16 %v466, %v466
        %v474 = vunpack.c.l.b16 %v469
        %v475 = vpack.c.b16 %v474, %v474
        %476 = vrot.lane.b32.xlu0 %v475, 120
        %v477 = vpop.permute.xlu0 %476
        %vm478 = vcmask 64512
        %v480 = vsel %vm478, %v469, 0
        %v483 = vsel %vm478, %v477, 0
        %485 = vmatpush.bf16.xpose.msra.mxu0 0
        %486 = vmatpush.bf16.xpose.msra.mxu0 0
        %487 = vmatpush.bf16.xpose.msra.mxu0 0
        %488 = vmatpush.bf16.xpose.msra.mxu0 0
        %489 = vmatpush.bf16.xpose.msra.mxu0 0
        %490 = vmatpush.bf16.xpose.msra.mxu0 0
        %491 = vmatpush.bf16.xpose.msra.mxu0 0
        %492 = vmatpush.bf16.xpose.msra.mxu0 %v483
        %493 = vmatmul.bf16.gmra.mxu0 %v480
        %v494 = vpop.f32.mrf.mxu0
        %v495 = vadd.f32 0.0, %v494
        %v496 = vpop.f32.mrf.mxu0
        %497 = vdwg.mxu0
        %v499 = vunpack.c.l.b16 %v470
        %v500 = vpack.c.b16 %v499, %v499
        %501 = vrot.lane.b32.xlu0 %v500, 120
        %v502 = vpop.permute.xlu0 %501
        %v504 = vsel %vm478, %v470, 0
        %v507 = vsel %vm478, %v502, 0
        %509 = vmatpush.bf16.xpose.msra.mxu0 0
        %510 = vmatpush.bf16.xpose.msra.mxu0 0
        %511 = vmatpush.bf16.xpose.msra.mxu0 0
        %512 = vmatpush.bf16.xpose.msra.mxu0 0
        %513 = vmatpush.bf16.xpose.msra.mxu0 0
        %514 = vmatpush.bf16.xpose.msra.mxu0 0
        %515 = vmatpush.bf16.xpose.msra.mxu0 0
        %516 = vmatpush.bf16.xpose.msra.mxu0 %v507
        %517 = vmatmul.bf16.gmra.mxu0 %v504
        %v518 = vpop.f32.mrf.mxu0
        %v519 = vadd.f32 0.0, %v518
        %v520 = vpop.f32.mrf.mxu0
        %521 = vdwg.mxu0
        %v523 = vunpack.c.l.b16 %v471
        %v524 = vpack.c.b16 %v523, %v523
        %525 = vrot.lane.b32.xlu0 %v524, 120
        %v526 = vpop.permute.xlu0 %525
        %v528 = vsel %vm478, %v471, 0
        %v531 = vsel %vm478, %v526, 0
        %533 = vmatpush.bf16.xpose.msra.mxu0 0
        %534 = vmatpush.bf16.xpose.msra.mxu0 0
        %535 = vmatpush.bf16.xpose.msra.mxu0 0
        %536 = vmatpush.bf16.xpose.msra.mxu0 0
        %537 = vmatpush.bf16.xpose.msra.mxu0 0
        %538 = vmatpush.bf16.xpose.msra.mxu0 0
        %539 = vmatpush.bf16.xpose.msra.mxu0 0
        %540 = vmatpush.bf16.xpose.msra.mxu0 %v531
        %541 = vmatmul.bf16.gmra.mxu0 %v528
        %v542 = vpop.f32.mrf.mxu0
        %v543 = vadd.f32 0.0, %v542
        %v544 = vpop.f32.mrf.mxu0
        %545 = vdwg.mxu0
        %v547 = vunpack.c.l.b16 %v472
        %v548 = vpack.c.b16 %v547, %v547
        %549 = vrot.lane.b32.xlu0 %v548, 120
        %v550 = vpop.permute.xlu0 %549
        %v552 = vsel %vm478, %v472, 0
        %v555 = vsel %vm478, %v550, 0
        %557 = vmatpush.bf16.xpose.msra.mxu0 0
        %558 = vmatpush.bf16.xpose.msra.mxu0 0
        %559 = vmatpush.bf16.xpose.msra.mxu0 0
        %560 = vmatpush.bf16.xpose.msra.mxu0 0
        %561 = vmatpush.bf16.xpose.msra.mxu0 0
        %562 = vmatpush.bf16.xpose.msra.mxu0 0
        %563 = vmatpush.bf16.xpose.msra.mxu0 0
        %564 = vmatpush.bf16.xpose.msra.mxu0 %v555
        %565 = vmatmul.bf16.gmra.mxu0 %v552
        %v566 = vpop.f32.mrf.mxu0
        %v567 = vadd.f32 0.0, %v566
        %v568 = vpop.f32.mrf.mxu0
        %569 = vdwg.mxu0
        %v570 = vmul.f32 %v495, 0.35355338
        %v571 = vmul.f32 %v519, 0.35355338
        %v572 = vmul.f32 %v543, 0.35355338
        %v573 = vmul.f32 %v567, 0.35355338
        %v575 = vperm.slane %v335, 0
        %v577 = vadd.f32 %v570, %v575
        %v578 = vadd.f32 %v571, %v575
        %v579 = vadd.f32 %v572, %v575
        %v580 = vadd.f32 %v573, %v575
        %v581 = vsel %vm478, %v577, -inf
        %582 = vmax.xlane.f32.xlu0 %v581
        %v583 = vpop.xlane.xlu0 %582
        %v584 = vsel %vm478, %v578, -inf
        %585 = vmax.xlane.f32.xlu0 %v584
        %v586 = vpop.xlane.xlu0 %585
        %v587 = vsel %vm478, %v579, -inf
        %588 = vmax.xlane.f32.xlu0 %v587
        %v589 = vpop.xlane.xlu0 %588
        %v590 = vsel %vm478, %v580, -inf
        %591 = vmax.xlane.f32.xlu0 %v590
        %v592 = vpop.xlane.xlu0 %591
        %v593 = vsub.f32 %v577, %v583
        %v594 = vsub.f32 %v578, %v586
        %v595 = vsub.f32 %v579, %v589
        %v596 = vsub.f32 %v580, %v592
        %v597 = vmul.f32 %v593, 1.442695
        %v598 = vpow.pop %v597
        %v599 = vmul.f32 %v594, 1.442695
        %v600 = vpow.pop %v599
        %v601 = vmul.f32 %v595, 1.442695
        %v602 = vpow.pop %v601
        %v603 = vmul.f32 %v596, 1.442695
        %v604 = vpow.pop %v603
        %v605 = vsel %vm478, %v598, 0.0
        %606 = vadd.xlane.f32.xlu0 %v605
        %v607 = vpop.xlane.xlu0 %606
        %v608 = vsel %vm478, %v600, 0.0
        %609 = vadd.xlane.f32.xlu0 %v608
        %v610 = vpop.xlane.xlu0 %609
        %v611 = vsel %vm478, %v602, 0.0
        %612 = vadd.xlane.f32.xlu0 %v611
        %v613 = vpop.xlane.xlu0 %612
        %v614 = vsel %vm478, %v604, 0.0
        %615 = vadd.xlane.f32.xlu0 %v614
        %v616 = vpop.xlane.xlu0 %615
        %v617 = vrcp.pop %v607
        %v618 = vrcp.pop %v610
        %v619 = vrcp.pop %v613
        %v620 = vrcp.pop %v616
        %v621 = vmul.f32 %v598, %v617
        %v622 = vmul.f32 %v600, %v618
        %v623 = vmul.f32 %v602, %v619
        %v624 = vmul.f32 %v604, %v620
        %v625 = vpack.c.bf16 %v621, %v621
        %v626 = vpack.c.bf16 %v622, %v622
        %v627 = vpack.c.bf16 %v623, %v623
        %v628 = vpack.c.bf16 %v624, %v624
        %629 = vrot.lane.b32.xlu0 %v475, 112
        %v630 = vpop.permute.xlu0 %629
        %v632 = vsel %vm478, %v625, 0
        %vm634 = vcmask 1043456
        %v636 = vsel %vm634, %v630, 0
        %638 = vmatpush.bf16.msra.mxu0 0
        %639 = vmatpush.bf16.msra.mxu0 0
        %640 = vmatpush.bf16.msra.mxu0 0
        %641 = vmatpush.bf16.msra.mxu0 0
        %642 = vmatpush.bf16.msra.mxu0 0
        %643 = vmatpush.bf16.msra.mxu0 0
        %644 = vmatpush.bf16.msra.mxu0 0
        %645 = vmatpush.bf16.msra.mxu0 %v636
        %646 = vmatmul.bf16.gmra.mxu0 %v632
        %v647 = vpop.f32.mrf.mxu0
        %v648 = vadd.f32 0.0, %v647
        %v649 = vpop.f32.mrf.mxu0
        %650 = vdwg.mxu0
        %651 = vrot.lane.b32.xlu0 %v500, 112
        %v652 = vpop.permute.xlu0 %651
        %v654 = vsel %vm478, %v626, 0
        %v657 = vsel %vm634, %v652, 0
        %659 = vmatpush.bf16.msra.mxu0 0
        %660 = vmatpush.bf16.msra.mxu0 0
        %661 = vmatpush.bf16.msra.mxu0 0
        %662 = vmatpush.bf16.msra.mxu0 0
        %663 = vmatpush.bf16.msra.mxu0 0
        %664 = vmatpush.bf16.msra.mxu0 0
        %665 = vmatpush.bf16.msra.mxu0 0
        %666 = vmatpush.bf16.msra.mxu0 %v657
        %667 = vmatmul.bf16.gmra.mxu0 %v654
        %v668 = vpop.f32.mrf.mxu0
        %v669 = vadd.f32 0.0, %v668
        %v670 = vpop.f32.mrf.mxu0
        %671 = vdwg.mxu0
        %672 = vrot.lane.b32.xlu0 %v524, 112
        %v673 = vpop.permute.xlu0 %672
        %v675 = vsel %vm478, %v627, 0
        %v678 = vsel %vm634, %v673, 0
        %680 = vmatpush.bf16.msra.mxu0 0
        %681 = vmatpush.bf16.msra.mxu0 0
        %682 = vmatpush.bf16.msra.mxu0 0
        %683 = vmatpush.bf16.msra.mxu0 0
        %684 = vmatpush.bf16.msra.mxu0 0
        %685 = vmatpush.bf16.msra.mxu0 0
        %686 = vmatpush.bf16.msra.mxu0 0
        %687 = vmatpush.bf16.msra.mxu0 %v678
        %688 = vmatmul.bf16.gmra.mxu0 %v675
        %v689 = vpop.f32.mrf.mxu0
        %v690 = vadd.f32 0.0, %v689
        %v691 = vpop.f32.mrf.mxu0
        %692 = vdwg.mxu0
        %693 = vrot.lane.b32.xlu0 %v548, 112
        %v694 = vpop.permute.xlu0 %693
        %v696 = vsel %vm478, %v628, 0
        %v699 = vsel %vm634, %v694, 0
        %701 = vmatpush.bf16.msra.mxu0 0
        %702 = vmatpush.bf16.msra.mxu0 0
        %703 = vmatpush.bf16.msra.mxu0 0
        %704 = vmatpush.bf16.msra.mxu0 0
        %705 = vmatpush.bf16.msra.mxu0 0
        %706 = vmatpush.bf16.msra.mxu0 0
        %707 = vmatpush.bf16.msra.mxu0 0
        %708 = vmatpush.bf16.msra.mxu0 %v699
        %709 = vmatmul.bf16.gmra.mxu0 %v696
        %v710 = vpop.f32.mrf.mxu0
        %v711 = vadd.f32 0.0, %v710
        %v712 = vpop.f32.mrf.mxu0
        %713 = vdwg.mxu0
        %v714 = vpack.c.bf16 %v648, %v648
        %v715 = vpack.c.bf16 %v669, %v669
        %v716 = vpack.c.bf16 %v690, %v690
        %v717 = vpack.c.bf16 %v711, %v711
        %v718 = vld [vmem:[%s4] sm:$0xf]
        %v719 = vld [vmem:[%s4 + $0x4] sm:$0xf]
        %v720 = vld [vmem:[%s4 + $0x8] sm:$0xf]
        %v721 = vld [vmem:[%s4 + $0xc] sm:$0xf]
        %v723 = vsel %vm478, %v714, 0
        %v726 = vsel %vm634, %v718, 0
        %728 = vmatpush.bf16.msra.mxu0 0
        %729 = vmatpush.bf16.msra.mxu0 0
        %730 = vmatpush.bf16.msra.mxu0 0
        %731 = vmatpush.bf16.msra.mxu0 0
        %732 = vmatpush.bf16.msra.mxu0 0
        %733 = vmatpush.bf16.msra.mxu0 0
        %734 = vmatpush.bf16.msra.mxu0 0
        %735 = vmatpush.bf16.msra.mxu0 %v726
        %736 = vmatmul.bf16.gmra.mxu0 %v723
        %v737 = vpop.f32.mrf.mxu0
        %v738 = vadd.f32 0.0, %v737
        %v739 = vpop.f32.mrf.mxu0
        %740 = vdwg.mxu0
        %v742 = vsel %vm478, %v715, 0
        %v745 = vsel %vm634, %v719, 0
        %747 = vmatpush.bf16.msra.mxu0 0
        %748 = vmatpush.bf16.msra.mxu0 0
        %749 = vmatpush.bf16.msra.mxu0 0
        %750 = vmatpush.bf16.msra.mxu0 0
        %751 = vmatpush.bf16.msra.mxu0 0
        %752 = vmatpush.bf16.msra.mxu0 0
        %753 = vmatpush.bf16.msra.mxu0 0
        %754 = vmatpush.bf16.msra.mxu0 %v745
        %755 = vmatmul.bf16.gmra.mxu0 %v742
        %v756 = vpop.f32.mrf.mxu0
        %v757 = vadd.f32 0.0, %v756
        %v758 = vpop.f32.mrf.mxu0
        %759 = vdwg.mxu0
        %v761 = vsel %vm478, %v716, 0
        %v764 = vsel %vm634, %v720, 0
        %766 = vmatpush.bf16.msra.mxu0 0
        %767 = vmatpush.bf16.msra.mxu0 0
        %768 = vmatpush.bf16.msra.mxu0 0
        %769 = vmatpush.bf16.msra.mxu0 0
        %770 = vmatpush.bf16.msra.mxu0 0
        %771 = vmatpush.bf16.msra.mxu0 0
        %772 = vmatpush.bf16.msra.mxu0 0
        %773 = vmatpush.bf16.msra.mxu0 %v764
        %774 = vmatmul.bf16.gmra.mxu0 %v761
        %v775 = vpop.f32.mrf.mxu0
        %v776 = vadd.f32 0.0, %v775
        %v777 = vpop.f32.mrf.mxu0
        %778 = vdwg.mxu0
        %v780 = vsel %vm478, %v717, 0
        %v783 = vsel %vm634, %v721, 0
        %785 = vmatpush.bf16.msra.mxu0 0
        %786 = vmatpush.bf16.msra.mxu0 0
        %787 = vmatpush.bf16.msra.mxu0 0
        %788 = vmatpush.bf16.msra.mxu0 0
        %789 = vmatpush.bf16.msra.mxu0 0
        %790 = vmatpush.bf16.msra.mxu0 0
        %791 = vmatpush.bf16.msra.mxu0 0
        %792 = vmatpush.bf16.msra.mxu0 %v783
        %793 = vmatmul.bf16.gmra.mxu0 %v780
        %v794 = vpop.f32.mrf.mxu0
        %v795 = vadd.f32 0.0, %v794
        %v796 = vpop.f32.mrf.mxu0
        %797 = vdwg.mxu0
        %v798 = vsel %vm296, %v738, 0.0
        %v799 = vsel %vm296, %v757, 0.0
        %v800 = vadd.f32 %v798, %v799
        %v801 = vsel %vm296, %v776, 0.0
        %v802 = vadd.f32 %v800, %v801
        %v803 = vsel %vm296, %v795, 0.0
        %v804 = vadd.f32 %v802, %v803
        %v805 = vld [vmem:[%s2 + $0x7] sm:$0x1]
        %v806 = vperm.slane %v805, 0
        %v807 = vadd.f32 %v804, %v806
        %v808 = vadd.f32 %v807, %v331
        %v809 = vsel %vm296, %v808, 0.0
        %810 = vadd.xlane.f32.xlu0 %v809
        %v811 = vpop.xlane.xlu0 %810
        %v812 = vmul.f32 %v811, %v306
        %v813 = vsub.f32 %v808, %v812
        %v814 = vmul.f32 %v813, %v813
        %v815 = vsel %vm296, %v814, 0.0
        %816 = vadd.xlane.f32.xlu0 %v815
        %v817 = vpop.xlane.xlu0 %816
        %v818 = vmul.f32 %v817, %v306
        %v819 = vadd.f32 %v818, 1e-05
        %v820 = vrsqrt.pop %v819
        %v821 = vmul.f32 %v820, %v819
        %v822 = vmul.f32 %v821, %v820
        %v823 = vmul.f32 0.5, %v822
        %v824 = vsub.f32 1.5, %v823
        %v825 = vmul.f32 %v820, %v824
        %vm826 = vweird.f32 %v819
        %vm827 = vweird.f32 %v820
        %vm828 = vmor %vm826, %vm827
        %v829 = vsel %vm828, %v820, %v825
        %v830 = vmul.f32 %v813, %v829
        %v831 = vld [vmem:[%s2 + $0x8] sm:$0x1]
        %v832 = vperm.slane %v831, 0
        %v833 = vmul.f32 %v830, %v832
        %v834 = vld [vmem:[%s2 + $0x9] sm:$0x1]
        %v835 = vperm.slane %v834, 0
        %v836 = vadd.f32 %v833, %v835
        %v837 = vld [vmem:[%s5] sm:$0xf]
        %v838 = vld [vmem:[%s5 + $0x4] sm:$0xf]
        %v839 = vld [vmem:[%s5 + $0x8] sm:$0xf]
        %v840 = vld [vmem:[%s5 + $0xc] sm:$0xf]
        %v841 = vld [vmem:[%s5 + $0x10] sm:$0xf]
        %v842 = vld [vmem:[%s5 + $0x14] sm:$0xf]
        %v843 = vld [vmem:[%s5 + $0x18] sm:$0xf]
        %v844 = vld [vmem:[%s5 + $0x1c] sm:$0xf]
        %v845 = vld [vmem:[%s5 + $0x20] sm:$0xf]
        %v846 = vld [vmem:[%s5 + $0x24] sm:$0xf]
        %v847 = vld [vmem:[%s5 + $0x28] sm:$0xf]
        %v848 = vld [vmem:[%s5 + $0x2c] sm:$0xf]
        %v849 = vld [vmem:[%s2 + $0xa] sm:$0x1]
        %v850 = vpack.c.bf16 %v836, %v836
        %v851 = vperm.slane %v849, 0
        %v856 = vunpack.c.l.b16 %v837
        %v857 = vunpack.c.l.b16 %v838
        %v858 = vunpack.c.l.b16 %v839
        %v859 = vunpack.c.l.b16 %v840
        %v860 = vpack.c.b16 %v857, %v856
        %v861 = vpack.c.b16 %v859, %v858
        %v865 = vsel %vm296, %v850, 0
        %867 = vmatpush.bf16.msra.mxu0 0
        %868 = vmatpush.bf16.msra.mxu0 0
        %869 = vmatpush.bf16.msra.mxu0 0
        %870 = vmatpush.bf16.msra.mxu0 0
        %871 = vmatpush.bf16.msra.mxu0 0
        %872 = vmatpush.bf16.msra.mxu0 0
        %873 = vmatpush.bf16.msra.mxu0 %v861
        %874 = vmatpush.bf16.msra.mxu0 %v860
        %875 = vmatmul.bf16.gmra.mxu0 %v865
        %v876 = vpop.f32.mrf.mxu0
        %v877 = vadd.f32 %v851, %v876
        %v878 = vpop.f32.mrf.mxu0
        %879 = vdwg.mxu0
        %v880 = vmul.f32 %v877, %v877
        %v881 = vmul.f32 %v877, %v880
        %v882 = vmul.f32 %v881, 0.044715
        %v883 = vadd.f32 %v877, %v882
        %v884 = vmul.f32 %v883, 0.7978846
        %v885 = vtanh.pop %v884
        %v886 = vadd.f32 %v885, 1.0
        %v887 = vmul.f32 %v886, 0.5
        %v888 = vmul.f32 %v877, %v887
        %v889 = vld [vmem:[%s2 + $0xb] sm:$0x1]
        %v890 = vpack.c.bf16 %v888, %v888
        %v891 = vperm.slane %v889, 0
        %v900 = vunpack.c.l.b16 %v841
        %v901 = vunpack.c.l.b16 %v842
        %v902 = vunpack.c.l.b16 %v843
        %v903 = vunpack.c.l.b16 %v844
        %v904 = vunpack.c.l.b16 %v845
        %v905 = vunpack.c.l.b16 %v846
        %v906 = vunpack.c.l.b16 %v847
        %v907 = vunpack.c.l.b16 %v848
        %v908 = vpack.c.b16 %v901, %v900
        %v909 = vpack.c.b16 %v903, %v902
        %v910 = vpack.c.b16 %v905, %v904
        %v911 = vpack.c.b16 %v907, %v906
        %vm916 = vcmask 523264
        %v918 = vsel %vm916, %v890, 0
        %920 = vmatpush.bf16.msra.mxu0 0
        %921 = vmatpush.bf16.msra.mxu0 0
        %922 = vmatpush.bf16.msra.mxu0 0
        %923 = vmatpush.bf16.msra.mxu0 0
        %924 = vmatpush.bf16.msra.mxu0 %v911
        %925 = vmatpush.bf16.msra.mxu0 %v910
        %926 = vmatpush.bf16.msra.mxu0 %v909
        %927 = vmatpush.bf16.msra.mxu0 %v908
        %928 = vmatmul.bf16.gmra.mxu0 %v918
        %v929 = vpop.f32.mrf.mxu0
        %v930 = vadd.f32 %v891, %v929
        %v931 = vpop.f32.mrf.mxu0
        %932 = vdwg.mxu0
        %v933 = vadd.f32 %v930, %v836
        %v934 = vsel %vm296, %v933, 0.0
        %935 = vadd.xlane.f32.xlu0 %v934
        %v936 = vpop.xlane.xlu0 %935
        %v937 = vmul.f32 %v936, %v306
        %v938 = vsub.f32 %v933, %v937
        %v939 = vmul.f32 %v938, %v938
        %v940 = vsel %vm296, %v939, 0.0
        %941 = vadd.xlane.f32.xlu0 %v940
        %v942 = vpop.xlane.xlu0 %941
        %v943 = vmul.f32 %v942, %v306
        %v944 = vadd.f32 %v943, 1e-05
        %v945 = vrsqrt.pop %v944
        %v946 = vmul.f32 %v945, %v944
        %v947 = vmul.f32 %v946, %v945
        %v948 = vmul.f32 0.5, %v947
        %v949 = vsub.f32 1.5, %v948
        %v950 = vmul.f32 %v945, %v949
        %vm951 = vweird.f32 %v944
        %vm952 = vweird.f32 %v945
        %vm953 = vmor %vm951, %vm952
        %v954 = vsel %vm953, %v945, %v950
        %v955 = vmul.f32 %v938, %v954
        %v956 = vld [vmem:[%s2 + $0xc] sm:$0x1]
        %v957 = vperm.slane %v956, 0
        %v958 = vmul.f32 %v955, %v957
        %v959 = vld [vmem:[%s2 + $0xd] sm:$0x1]
        %v960 = vperm.slane %v959, 0
        %v961 = vadd.f32 %v958, %v960
        %s962 = scalar_lea.vmem %s280, 8 [#allocation2]
        %963 = vst.msk [vmem:[%s962] sm:$0xff] %vm296, %v961
        %v964 = vpack.c.bf16 %v961, %v961
        %v965 = vld [vmem:[%s2 + $0xe] sm:$0xf]
        %s966 = scalar_lea.vmem %s3, 64
        %v967 = vld [vmem:[%s966] sm:$0xf]
        %v968 = vld [vmem:[%s966 + $0x4] sm:$0xf]
        %v969 = vld [vmem:[%s966 + $0x8] sm:$0xf]
        %v970 = vld [vmem:[%s966 + $0xc] sm:$0xf]
        %v971 = vld [vmem:[%s966 + $0x10] sm:$0xf]
        %v972 = vld [vmem:[%s966 + $0x14] sm:$0xf]
        %v973 = vld [vmem:[%s966 + $0x18] sm:$0xf]
        %v974 = vld [vmem:[%s966 + $0x1c] sm:$0xf]
        %v975 = vld [vmem:[%s966 + $0x20] sm:$0xf]
        %v976 = vld [vmem:[%s966 + $0x24] sm:$0xf]
        %v977 = vld [vmem:[%s966 + $0x28] sm:$0xf]
        %v978 = vld [vmem:[%s966 + $0x2c] sm:$0xf]
        %v979 = vld [vmem:[%s966 + $0x30] sm:$0xf]
        %v980 = vld [vmem:[%s966 + $0x34] sm:$0xf]
        %v981 = vld [vmem:[%s966 + $0x38] sm:$0xf]
        %v982 = vld [vmem:[%s966 + $0x3c] sm:$0xf]
        %v984 = vrot.slane %v965, 1
        %v985 = vrot.slane %v965, 2
        %v986 = vrot.slane %v965, 3
        %v987 = vperm.slane %v965, 0
        %v988 = vperm.slane %v984, 0
        %v989 = vperm.slane %v985, 0
        %v990 = vperm.slane %v986, 0
        %v999 = vunpack.c.l.b16 %v967
        %v1000 = vunpack.c.l.b16 %v968
        %v1001 = vunpack.c.l.b16 %v969
        %v1002 = vunpack.c.l.b16 %v970
        %v1003 = vpack.c.b16 %v1000, %v999
        %v1004 = vpack.c.b16 %v1002, %v1001
        %v1008 = vsel %vm296, %v964, 0
        %1010 = vmatpush.bf16.msra.mxu0 0
        %1011 = vmatpush.bf16.msra.mxu0 0
        %1012 = vmatpush.bf16.msra.mxu0 0
        %1013 = vmatpush.bf16.msra.mxu0 0
        %1014 = vmatpush.bf16.msra.mxu0 0
        %1015 = vmatpush.bf16.msra.mxu0 0
        %1016 = vmatpush.bf16.msra.mxu0 %v1004
        %1017 = vmatpush.bf16.msra.mxu0 %v1003
        %1018 = vmatmul.bf16.gmra.mxu0 %v1008
        %v1019 = vpop.f32.mrf.mxu0
        %v1020 = vadd.f32 %v987, %v1019
        %v1021 = vpop.f32.mrf.mxu0
        %1022 = vdwg.mxu0
        %v1027 = vunpack.c.l.b16 %v971
        %v1028 = vunpack.c.l.b16 %v972
        %v1029 = vunpack.c.l.b16 %v973
        %v1030 = vunpack.c.l.b16 %v974
        %v1031 = vpack.c.b16 %v1028, %v1027
        %v1032 = vpack.c.b16 %v1030, %v1029
        %1035 = vmatpush.bf16.msra.mxu0 0
        %1036 = vmatpush.bf16.msra.mxu0 0
        %1037 = vmatpush.bf16.msra.mxu0 0
        %1038 = vmatpush.bf16.msra.mxu0 0
        %1039 = vmatpush.bf16.msra.mxu0 0
        %1040 = vmatpush.bf16.msra.mxu0 0
        %1041 = vmatpush.bf16.msra.mxu0 %v1032
        %1042 = vmatpush.bf16.msra.mxu0 %v1031
        %1043 = vmatmul.bf16.gmra.mxu0 %v1008
        %v1044 = vpop.f32.mrf.mxu0
        %v1045 = vadd.f32 %v988, %v1044
        %v1046 = vpop.f32.mrf.mxu0
        %1047 = vdwg.mxu0
        %v1052 = vunpack.c.l.b16 %v975
        %v1053 = vunpack.c.l.b16 %v976
        %v1054 = vunpack.c.l.b16 %v977
        %v1055 = vunpack.c.l.b16 %v978
        %v1056 = vpack.c.b16 %v1053, %v1052
        %v1057 = vpack.c.b16 %v1055, %v1054
        %1060 = vmatpush.bf16.msra.mxu0 0
        %1061 = vmatpush.bf16.msra.mxu0 0
        %1062 = vmatpush.bf16.msra.mxu0 0
        %1063 = vmatpush.bf16.msra.mxu0 0
        %1064 = vmatpush.bf16.msra.mxu0 0
        %1065 = vmatpush.bf16.msra.mxu0 0
        %1066 = vmatpush.bf16.msra.mxu0 %v1057
        %1067 = vmatpush.bf16.msra.mxu0 %v1056
        %1068 = vmatmul.bf16.gmra.mxu0 %v1008
        %v1069 = vpop.f32.mrf.mxu0
        %v1070 = vadd.f32 %v989, %v1069
        %v1071 = vpop.f32.mrf.mxu0
        %1072 = vdwg.mxu0
        %v1077 = vunpack.c.l.b16 %v979
        %v1078 = vunpack.c.l.b16 %v980
        %v1079 = vunpack.c.l.b16 %v981
        %v1080 = vunpack.c.l.b16 %v982
        %v1081 = vpack.c.b16 %v1078, %v1077
        %v1082 = vpack.c.b16 %v1080, %v1079
        %1085 = vmatpush.bf16.msra.mxu0 0
        %1086 = vmatpush.bf16.msra.mxu0 0
        %1087 = vmatpush.bf16.msra.mxu0 0
        %1088 = vmatpush.bf16.msra.mxu0 0
        %1089 = vmatpush.bf16.msra.mxu0 0
        %1090 = vmatpush.bf16.msra.mxu0 0
        %1091 = vmatpush.bf16.msra.mxu0 %v1082
        %1092 = vmatpush.bf16.msra.mxu0 %v1081
        %1093 = vmatmul.bf16.gmra.mxu0 %v1008
        %v1094 = vpop.f32.mrf.mxu0
        %v1095 = vadd.f32 %v990, %v1094
        %v1096 = vpop.f32.mrf.mxu0
        %1097 = vdwg.mxu0
        %v1098 = vpack.c.bf16 %v1020, %v1020
        %v1099 = vpack.c.bf16 %v1045, %v1045
        %v1100 = vpack.c.bf16 %v1070, %v1070
        %v1101 = vpack.c.bf16 %v1095, %v1095
        %v1103 = vunpack.c.l.b16 %v1098
        %v1104 = vpack.c.b16 %v1103, %v1103
        %1105 = vrot.lane.b32.xlu0 %v1104, 120
        %v1106 = vpop.permute.xlu0 %1105
        %v1108 = vsel %vm478, %v1098, 0
        %v1111 = vsel %vm478, %v1106, 0
        %1113 = vmatpush.bf16.xpose.msra.mxu0 0
        %1114 = vmatpush.bf16.xpose.msra.mxu0 0
        %1115 = vmatpush.bf16.xpose.msra.mxu0 0
        %1116 = vmatpush.bf16.xpose.msra.mxu0 0
        %1117 = vmatpush.bf16.xpose.msra.mxu0 0
        %1118 = vmatpush.bf16.xpose.msra.mxu0 0
        %1119 = vmatpush.bf16.xpose.msra.mxu0 0
        %1120 = vmatpush.bf16.xpose.msra.mxu0 %v1111
        %1121 = vmatmul.bf16.gmra.mxu0 %v1108
        %v1122 = vpop.f32.mrf.mxu0
        %v1123 = vadd.f32 0.0, %v1122
        %v1124 = vpop.f32.mrf.mxu0
        %1125 = vdwg.mxu0
        %v1127 = vunpack.c.l.b16 %v1099
        %v1128 = vpack.c.b16 %v1127, %v1127
        %1129 = vrot.lane.b32.xlu0 %v1128, 120
        %v1130 = vpop.permute.xlu0 %1129
        %v1132 = vsel %vm478, %v1099, 0
        %v1135 = vsel %vm478, %v1130, 0
        %1137 = vmatpush.bf16.xpose.msra.mxu0 0
        %1138 = vmatpush.bf16.xpose.msra.mxu0 0
        %1139 = vmatpush.bf16.xpose.msra.mxu0 0
        %1140 = vmatpush.bf16.xpose.msra.mxu0 0
        %1141 = vmatpush.bf16.xpose.msra.mxu0 0
        %1142 = vmatpush.bf16.xpose.msra.mxu0 0
        %1143 = vmatpush.bf16.xpose.msra.mxu0 0
        %1144 = vmatpush.bf16.xpose.msra.mxu0 %v1135
        %1145 = vmatmul.bf16.gmra.mxu0 %v1132
        %v1146 = vpop.f32.mrf.mxu0
        %v1147 = vadd.f32 0.0, %v1146
        %v1148 = vpop.f32.mrf.mxu0
        %1149 = vdwg.mxu0
        %v1151 = vunpack.c.l.b16 %v1100
        %v1152 = vpack.c.b16 %v1151, %v1151
        %1153 = vrot.lane.b32.xlu0 %v1152, 120
        %v1154 = vpop.permute.xlu0 %1153
        %v1156 = vsel %vm478, %v1100, 0
        %v1159 = vsel %vm478, %v1154, 0
        %1161 = vmatpush.bf16.xpose.msra.mxu0 0
        %1162 = vmatpush.bf16.xpose.msra.mxu0 0
        %1163 = vmatpush.bf16.xpose.msra.mxu0 0
        %1164 = vmatpush.bf16.xpose.msra.mxu0 0
        %1165 = vmatpush.bf16.xpose.msra.mxu0 0
        %1166 = vmatpush.bf16.xpose.msra.mxu0 0
        %1167 = vmatpush.bf16.xpose.msra.mxu0 0
        %1168 = vmatpush.bf16.xpose.msra.mxu0 %v1159
        %1169 = vmatmul.bf16.gmra.mxu0 %v1156
        %v1170 = vpop.f32.mrf.mxu0
        %v1171 = vadd.f32 0.0, %v1170
        %v1172 = vpop.f32.mrf.mxu0
        %1173 = vdwg.mxu0
        %v1175 = vunpack.c.l.b16 %v1101
        %v1176 = vpack.c.b16 %v1175, %v1175
        %1177 = vrot.lane.b32.xlu0 %v1176, 120
        %v1178 = vpop.permute.xlu0 %1177
        %v1180 = vsel %vm478, %v1101, 0
        %v1183 = vsel %vm478, %v1178, 0
        %1185 = vmatpush.bf16.xpose.msra.mxu0 0
        %1186 = vmatpush.bf16.xpose.msra.mxu0 0
        %1187 = vmatpush.bf16.xpose.msra.mxu0 0
        %1188 = vmatpush.bf16.xpose.msra.mxu0 0
        %1189 = vmatpush.bf16.xpose.msra.mxu0 0
        %1190 = vmatpush.bf16.xpose.msra.mxu0 0
        %1191 = vmatpush.bf16.xpose.msra.mxu0 0
        %1192 = vmatpush.bf16.xpose.msra.mxu0 %v1183
        %1193 = vmatmul.bf16.gmra.mxu0 %v1180
        %v1194 = vpop.f32.mrf.mxu0
        %v1195 = vadd.f32 0.0, %v1194
        %v1196 = vpop.f32.mrf.mxu0
        %1197 = vdwg.mxu0
        %v1198 = vmul.f32 %v1123, 0.35355338
        %v1199 = vmul.f32 %v1147, 0.35355338
        %v1200 = vmul.f32 %v1171, 0.35355338
        %v1201 = vmul.f32 %v1195, 0.35355338
        %v1202 = vadd.f32 %v1198, %v575
        %v1203 = vadd.f32 %v1199, %v575
        %v1204 = vadd.f32 %v1200, %v575
        %v1205 = vadd.f32 %v1201, %v575
        %v1206 = vsel %vm478, %v1202, -inf
        %1207 = vmax.xlane.f32.xlu0 %v1206
        %v1208 = vpop.xlane.xlu0 %1207
        %v1209 = vsel %vm478, %v1203, -inf
        %1210 = vmax.xlane.f32.xlu0 %v1209
        %v1211 = vpop.xlane.xlu0 %1210
        %v1212 = vsel %vm478, %v1204, -inf
        %1213 = vmax.xlane.f32.xlu0 %v1212
        %v1214 = vpop.xlane.xlu0 %1213
        %v1215 = vsel %vm478, %v1205, -inf
        %1216 = vmax.xlane.f32.xlu0 %v1215
        %v1217 = vpop.xlane.xlu0 %1216
        %v1218 = vsub.f32 %v1202, %v1208
        %v1219 = vsub.f32 %v1203, %v1211
        %v1220 = vsub.f32 %v1204, %v1214
        %v1221 = vsub.f32 %v1205, %v1217
        %v1222 = vmul.f32 %v1218, 1.442695
        %v1223 = vpow.pop %v1222
        %v1224 = vmul.f32 %v1219, 1.442695
        %v1225 = vpow.pop %v1224
        %v1226 = vmul.f32 %v1220, 1.442695
        %v1227 = vpow.pop %v1226
        %v1228 = vmul.f32 %v1221, 1.442695
        %v1229 = vpow.pop %v1228
        %v1230 = vsel %vm478, %v1223, 0.0
        %1231 = vadd.xlane.f32.xlu0 %v1230
        %v1232 = vpop.xlane.xlu0 %1231
        %v1233 = vsel %vm478, %v1225, 0.0
        %1234 = vadd.xlane.f32.xlu0 %v1233
        %v1235 = vpop.xlane.xlu0 %1234
        %v1236 = vsel %vm478, %v1227, 0.0
        %1237 = vadd.xlane.f32.xlu0 %v1236
        %v1238 = vpop.xlane.xlu0 %1237
        %v1239 = vsel %vm478, %v1229, 0.0
        %1240 = vadd.xlane.f32.xlu0 %v1239
        %v1241 = vpop.xlane.xlu0 %1240
        %v1242 = vrcp.pop %v1232
        %v1243 = vrcp.pop %v1235
        %v1244 = vrcp.pop %v1238
        %v1245 = vrcp.pop %v1241
        %v1246 = vmul.f32 %v1223, %v1242
        %v1247 = vmul.f32 %v1225, %v1243
        %v1248 = vmul.f32 %v1227, %v1244
        %v1249 = vmul.f32 %v1229, %v1245
        %v1250 = vpack.c.bf16 %v1246, %v1246
        %v1251 = vpack.c.bf16 %v1247, %v1247
        %v1252 = vpack.c.bf16 %v1248, %v1248
        %v1253 = vpack.c.bf16 %v1249, %v1249
        %1254 = vrot.lane.b32.xlu0 %v1104, 112
        %v1255 = vpop.permute.xlu0 %1254
        %v1257 = vsel %vm478, %v1250, 0
        %v1260 = vsel %vm634, %v1255, 0
        %1262 = vmatpush.bf16.msra.mxu0 0
        %1263 = vmatpush.bf16.msra.mxu0 0
        %1264 = vmatpush.bf16.msra.mxu0 0
        %1265 = vmatpush.bf16.msra.mxu0 0
        %1266 = vmatpush.bf16.msra.mxu0 0
        %1267 = vmatpush.bf16.msra.mxu0 0
        %1268 = vmatpush.bf16.msra.mxu0 0
        %1269 = vmatpush.bf16.msra.mxu0 %v1260
        %1270 = vmatmul.bf16.gmra.mxu0 %v1257
        %v1271 = vpop.f32.mrf.mxu0
        %v1272 = vadd.f32 0.0, %v1271
        %v1273 = vpop.f32.mrf.mxu0
        %1274 = vdwg.mxu0
        %1275 = vrot.lane.b32.xlu0 %v1128, 112
        %v1276 = vpop.permute.xlu0 %1275
        %v1278 = vsel %vm478, %v1251, 0
        %v1281 = vsel %vm634, %v1276, 0
        %1283 = vmatpush.bf16.msra.mxu0 0
        %1284 = vmatpush.bf16.msra.mxu0 0
        %1285 = vmatpush.bf16.msra.mxu0 0
        %1286 = vmatpush.bf16.msra.mxu0 0
        %1287 = vmatpush.bf16.msra.mxu0 0
        %1288 = vmatpush.bf16.msra.mxu0 0
        %1289 = vmatpush.bf16.msra.mxu0 0
        %1290 = vmatpush.bf16.msra.mxu0 %v1281
        %1291 = vmatmul.bf16.gmra.mxu0 %v1278
        %v1292 = vpop.f32.mrf.mxu0
        %v1293 = vadd.f32 0.0, %v1292
        %v1294 = vpop.f32.mrf.mxu0
        %1295 = vdwg.mxu0
        %1296 = vrot.lane.b32.xlu0 %v1152, 112
        %v1297 = vpop.permute.xlu0 %1296
        %v1299 = vsel %vm478, %v1252, 0
        %v1302 = vsel %vm634, %v1297, 0
        %1304 = vmatpush.bf16.msra.mxu0 0
        %1305 = vmatpush.bf16.msra.mxu0 0
        %1306 = vmatpush.bf16.msra.mxu0 0
        %1307 = vmatpush.bf16.msra.mxu0 0
        %1308 = vmatpush.bf16.msra.mxu0 0
        %1309 = vmatpush.bf16.msra.mxu0 0
        %1310 = vmatpush.bf16.msra.mxu0 0
        %1311 = vmatpush.bf16.msra.mxu0 %v1302
        %1312 = vmatmul.bf16.gmra.mxu0 %v1299
        %v1313 = vpop.f32.mrf.mxu0
        %v1314 = vadd.f32 0.0, %v1313
        %v1315 = vpop.f32.mrf.mxu0
        %1316 = vdwg.mxu0
        %1317 = vrot.lane.b32.xlu0 %v1176, 112
        %v1318 = vpop.permute.xlu0 %1317
        %v1320 = vsel %vm478, %v1253, 0
        %v1323 = vsel %vm634, %v1318, 0
        %1325 = vmatpush.bf16.msra.mxu0 0
        %1326 = vmatpush.bf16.msra.mxu0 0
        %1327 = vmatpush.bf16.msra.mxu0 0
        %1328 = vmatpush.bf16.msra.mxu0 0
        %1329 = vmatpush.bf16.msra.mxu0 0
        %1330 = vmatpush.bf16.msra.mxu0 0
        %1331 = vmatpush.bf16.msra.mxu0 0
        %1332 = vmatpush.bf16.msra.mxu0 %v1323
        %1333 = vmatmul.bf16.gmra.mxu0 %v1320
        %v1334 = vpop.f32.mrf.mxu0
        %v1335 = vadd.f32 0.0, %v1334
        %v1336 = vpop.f32.mrf.mxu0
        %1337 = vdwg.mxu0
        %v1338 = vpack.c.bf16 %v1272, %v1272
        %v1339 = vpack.c.bf16 %v1293, %v1293
        %v1340 = vpack.c.bf16 %v1314, %v1314
        %v1341 = vpack.c.bf16 %v1335, %v1335
        %s1342 = scalar_lea.vmem %s4, 16
        %v1343 = vld [vmem:[%s1342] sm:$0xf]
        %v1344 = vld [vmem:[%s1342 + $0x4] sm:$0xf]
        %v1345 = vld [vmem:[%s1342 + $0x8] sm:$0xf]
        %v1346 = vld [vmem:[%s1342 + $0xc] sm:$0xf]
        %v1348 = vsel %vm478, %v1338, 0
        %v1351 = vsel %vm634, %v1343, 0
        %1353 = vmatpush.bf16.msra.mxu0 0
        %1354 = vmatpush.bf16.msra.mxu0 0
        %1355 = vmatpush.bf16.msra.mxu0 0
        %1356 = vmatpush.bf16.msra.mxu0 0
        %1357 = vmatpush.bf16.msra.mxu0 0
        %1358 = vmatpush.bf16.msra.mxu0 0
        %1359 = vmatpush.bf16.msra.mxu0 0
        %1360 = vmatpush.bf16.msra.mxu0 %v1351
        %1361 = vmatmul.bf16.gmra.mxu0 %v1348
        %v1362 = vpop.f32.mrf.mxu0
        %v1363 = vadd.f32 0.0, %v1362
        %v1364 = vpop.f32.mrf.mxu0
        %1365 = vdwg.mxu0
        %v1367 = vsel %vm478, %v1339, 0
        %v1370 = vsel %vm634, %v1344, 0
        %1372 = vmatpush.bf16.msra.mxu0 0
        %1373 = vmatpush.bf16.msra.mxu0 0
        %1374 = vmatpush.bf16.msra.mxu0 0
        %1375 = vmatpush.bf16.msra.mxu0 0
        %1376 = vmatpush.bf16.msra.mxu0 0
        %1377 = vmatpush.bf16.msra.mxu0 0
        %1378 = vmatpush.bf16.msra.mxu0 0
        %1379 = vmatpush.bf16.msra.mxu0 %v1370
        %1380 = vmatmul.bf16.gmra.mxu0 %v1367
        %v1381 = vpop.f32.mrf.mxu0
        %v1382 = vadd.f32 0.0, %v1381
        %v1383 = vpop.f32.mrf.mxu0
        %1384 = vdwg.mxu0
        %v1386 = vsel %vm478, %v1340, 0
        %v1389 = vsel %vm634, %v1345, 0
        %1391 = vmatpush.bf16.msra.mxu0 0
        %1392 = vmatpush.bf16.msra.mxu0 0
        %1393 = vmatpush.bf16.msra.mxu0 0
        %1394 = vmatpush.bf16.msra.mxu0 0
        %1395 = vmatpush.bf16.msra.mxu0 0
        %1396 = vmatpush.bf16.msra.mxu0 0
        %1397 = vmatpush.bf16.msra.mxu0 0
        %1398 = vmatpush.bf16.msra.mxu0 %v1389
        %1399 = vmatmul.bf16.gmra.mxu0 %v1386
        %v1400 = vpop.f32.mrf.mxu0
        %v1401 = vadd.f32 0.0, %v1400
        %v1402 = vpop.f32.mrf.mxu0
        %1403 = vdwg.mxu0
        %v1405 = vsel %vm478, %v1341, 0
        %v1408 = vsel %vm634, %v1346, 0
        %1410 = vmatpush.bf16.msra.mxu0 0
        %1411 = vmatpush.bf16.msra.mxu0 0
        %1412 = vmatpush.bf16.msra.mxu0 0
        %1413 = vmatpush.bf16.msra.mxu0 0
        %1414 = vmatpush.bf16.msra.mxu0 0
        %1415 = vmatpush.bf16.msra.mxu0 0
        %1416 = vmatpush.bf16.msra.mxu0 0
        %1417 = vmatpush.bf16.msra.mxu0 %v1408
        %1418 = vmatmul.bf16.gmra.mxu0 %v1405
        %v1419 = vpop.f32.mrf.mxu0
        %v1420 = vadd.f32 0.0, %v1419
        %v1421 = vpop.f32.mrf.mxu0
        %1422 = vdwg.mxu0
        %v1423 = vsel %vm296, %v1363, 0.0
        %v1424 = vsel %vm296, %v1382, 0.0
        %v1425 = vadd.f32 %v1423, %v1424
        %v1426 = vsel %vm296, %v1401, 0.0
        %v1427 = vadd.f32 %v1425, %v1426
        %v1428 = vsel %vm296, %v1420, 0.0
        %v1429 = vadd.f32 %v1427, %v1428
        %v1430 = vld [vmem:[%s2 + $0x12] sm:$0x1]
        %v1431 = vperm.slane %v1430, 0
        %v1432 = vadd.f32 %v1429, %v1431
        %v1433 = vadd.f32 %v1432, %v961
        %v1434 = vsel %vm296, %v1433, 0.0
        %1435 = vadd.xlane.f32.xlu0 %v1434
        %v1436 = vpop.xlane.xlu0 %1435
        %v1437 = vmul.f32 %v1436, %v306
        %v1438 = vsub.f32 %v1433, %v1437
        %v1439 = vmul.f32 %v1438, %v1438
        %v1440 = vsel %vm296, %v1439, 0.0
        %1441 = vadd.xlane.f32.xlu0 %v1440
        %v1442 = vpop.xlane.xlu0 %1441
        %v1443 = vmul.f32 %v1442, %v306
        %v1444 = vadd.f32 %v1443, 1e-05
        %v1445 = vrsqrt.pop %v1444
        %v1446 = vmul.f32 %v1445, %v1444
        %v1447 = vmul.f32 %v1446, %v1445
        %v1448 = vmul.f32 0.5, %v1447
        %v1449 = vsub.f32 1.5, %v1448
        %v1450 = vmul.f32 %v1445, %v1449
        %vm1451 = vweird.f32 %v1444
        %vm1452 = vweird.f32 %v1445
        %vm1453 = vmor %vm1451, %vm1452
        %v1454 = vsel %vm1453, %v1445, %v1450
        %v1455 = vmul.f32 %v1438, %v1454
        %v1456 = vld [vmem:[%s2 + $0x13] sm:$0x1]
        %v1457 = vperm.slane %v1456, 0
        %v1458 = vmul.f32 %v1455, %v1457
        %v1459 = vld [vmem:[%s2 + $0x14] sm:$0x1]
        %v1460 = vperm.slane %v1459, 0
        %v1461 = vadd.f32 %v1458, %v1460
        %s1462 = scalar_lea.vmem %s5, 48
        %v1463 = vld [vmem:[%s1462] sm:$0xf]
        %v1464 = vld [vmem:[%s1462 + $0x4] sm:$0xf]
        %v1465 = vld [vmem:[%s1462 + $0x8] sm:$0xf]
        %v1466 = vld [vmem:[%s1462 + $0xc] sm:$0xf]
        %v1467 = vld [vmem:[%s1462 + $0x10] sm:$0xf]
        %v1468 = vld [vmem:[%s1462 + $0x14] sm:$0xf]
        %v1469 = vld [vmem:[%s1462 + $0x18] sm:$0xf]
        %v1470 = vld [vmem:[%s1462 + $0x1c] sm:$0xf]
        %v1471 = vld [vmem:[%s1462 + $0x20] sm:$0xf]
        %v1472 = vld [vmem:[%s1462 + $0x24] sm:$0xf]
        %v1473 = vld [vmem:[%s1462 + $0x28] sm:$0xf]
        %v1474 = vld [vmem:[%s1462 + $0x2c] sm:$0xf]
        %v1475 = vld [vmem:[%s2 + $0x15] sm:$0x1]
        %v1476 = vpack.c.bf16 %v1461, %v1461
        %v1477 = vperm.slane %v1475, 0
        %v1482 = vunpack.c.l.b16 %v1463
        %v1483 = vunpack.c.l.b16 %v1464
        %v1484 = vunpack.c.l.b16 %v1465
        %v1485 = vunpack.c.l.b16 %v1466
        %v1486 = vpack.c.b16 %v1483, %v1482
        %v1487 = vpack.c.b16 %v1485, %v1484
        %v1491 = vsel %vm296, %v1476, 0
        %1493 = vmatpush.bf16.msra.mxu0 0
        %1494 = vmatpush.bf16.msra.mxu0 0
        %1495 = vmatpush.bf16.msra.mxu0 0
        %1496 = vmatpush.bf16.msra.mxu0 0
        %1497 = vmatpush.bf16.msra.mxu0 0
        %1498 = vmatpush.bf16.msra.mxu0 0
        %1499 = vmatpush.bf16.msra.mxu0 %v1487
        %1500 = vmatpush.bf16.msra.mxu0 %v1486
        %1501 = vmatmul.bf16.gmra.mxu0 %v1491
        %v1502 = vpop.f32.mrf.mxu0
        %v1503 = vadd.f32 %v1477, %v1502
        %v1504 = vpop.f32.mrf.mxu0
        %1505 = vdwg.mxu0
        %v1506 = vmul.f32 %v1503, %v1503
        %v1507 = vmul.f32 %v1503, %v1506
        %v1508 = vmul.f32 %v1507, 0.044715
        %v1509 = vadd.f32 %v1503, %v1508
        %v1510 = vmul.f32 %v1509, 0.7978846
        %v1511 = vtanh.pop %v1510
        %v1512 = vadd.f32 %v1511, 1.0
        %v1513 = vmul.f32 %v1512, 0.5
        %v1514 = vmul.f32 %v1503, %v1513
        %v1515 = vld [vmem:[%s2 + $0x16] sm:$0x1]
        %v1516 = vpack.c.bf16 %v1514, %v1514
        %v1517 = vperm.slane %v1515, 0
        %v1526 = vunpack.c.l.b16 %v1467
        %v1527 = vunpack.c.l.b16 %v1468
        %v1528 = vunpack.c.l.b16 %v1469
        %v1529 = vunpack.c.l.b16 %v1470
        %v1530 = vunpack.c.l.b16 %v1471
        %v1531 = vunpack.c.l.b16 %v1472
        %v1532 = vunpack.c.l.b16 %v1473
        %v1533 = vunpack.c.l.b16 %v1474
        %v1534 = vpack.c.b16 %v1527, %v1526
        %v1535 = vpack.c.b16 %v1529, %v1528
        %v1536 = vpack.c.b16 %v1531, %v1530
        %v1537 = vpack.c.b16 %v1533, %v1532
        %v1543 = vsel %vm916, %v1516, 0
        %1545 = vmatpush.bf16.msra.mxu0 0
        %1546 = vmatpush.bf16.msra.mxu0 0
        %1547 = vmatpush.bf16.msra.mxu0 0
        %1548 = vmatpush.bf16.msra.mxu0 0
        %1549 = vmatpush.bf16.msra.mxu0 %v1537
        %1550 = vmatpush.bf16.msra.mxu0 %v1536
        %1551 = vmatpush.bf16.msra.mxu0 %v1535
        %1552 = vmatpush.bf16.msra.mxu0 %v1534
        %1553 = vmatmul.bf16.gmra.mxu0 %v1543
        %v1554 = vpop.f32.mrf.mxu0
        %v1555 = vadd.f32 %v1517, %v1554
        %v1556 = vpop.f32.mrf.mxu0
        %1557 = vdwg.mxu0
        %v1558 = vadd.f32 %v1555, %v1461
        %v1559 = vsel %vm296, %v1558, 0.0
        %1560 = vadd.xlane.f32.xlu0 %v1559
        %v1561 = vpop.xlane.xlu0 %1560
        %v1562 = vmul.f32 %v1561, %v306
        %v1563 = vsub.f32 %v1558, %v1562
        %v1564 = vmul.f32 %v1563, %v1563
        %v1565 = vsel %vm296, %v1564, 0.0
        %1566 = vadd.xlane.f32.xlu0 %v1565
        %v1567 = vpop.xlane.xlu0 %1566
        %v1568 = vmul.f32 %v1567, %v306
        %v1569 = vadd.f32 %v1568, 1e-05
        %v1570 = vrsqrt.pop %v1569
        %v1571 = vmul.f32 %v1570, %v1569
        %v1572 = vmul.f32 %v1571, %v1570
        %v1573 = vmul.f32 0.5, %v1572
        %v1574 = vsub.f32 1.5, %v1573
        %v1575 = vmul.f32 %v1570, %v1574
        %vm1576 = vweird.f32 %v1569
        %vm1577 = vweird.f32 %v1570
        %vm1578 = vmor %vm1576, %vm1577
        %v1579 = vsel %vm1578, %v1570, %v1575
        %v1580 = vmul.f32 %v1563, %v1579
        %v1581 = vld [vmem:[%s2 + $0x17] sm:$0x1]
        %v1582 = vperm.slane %v1581, 0
        %v1583 = vmul.f32 %v1580, %v1582
        %v1584 = vld [vmem:[%s2 + $0x18] sm:$0x1]
        %v1585 = vperm.slane %v1584, 0
        %v1586 = vadd.f32 %v1583, %v1585
        %s1587 = scalar_lea.vmem %s280, 16 [#allocation2]
        %1588 = vst.msk [vmem:[%s1587] sm:$0xff] %vm296, %v1586
        %s1589 = scalar_lea.vmem %s5, 96
        %v1590 = vld [vmem:[%s1589] sm:$0xf]
        %v1591 = vld [vmem:[%s1589 + $0x4] sm:$0xf]
        %v1592 = vld [vmem:[%s1589 + $0x8] sm:$0xf]
        %v1593 = vld [vmem:[%s1589 + $0xc] sm:$0xf]
        %v1594 = vld [vmem:[%s2 + $0x2] sm:$0x1]
        %v1595 = vpack.c.bf16 %v1586, %v1586
        %v1600 = vunpack.c.l.b16 %v1590
        %v1601 = vunpack.c.l.b16 %v1591
        %v1602 = vunpack.c.l.b16 %v1592
        %v1603 = vunpack.c.l.b16 %v1593
        %v1604 = vpack.c.b16 %v1601, %v1600
        %v1605 = vpack.c.b16 %v1603, %v1602
        %v1609 = vsel %vm296, %v1595, 0
        %1611 = vmatpush.bf16.msra.mxu0 0
        %1612 = vmatpush.bf16.msra.mxu0 0
        %1613 = vmatpush.bf16.msra.mxu0 0
        %1614 = vmatpush.bf16.msra.mxu0 0
        %1615 = vmatpush.bf16.msra.mxu0 0
        %1616 = vmatpush.bf16.msra.mxu0 0
        %1617 = vmatpush.bf16.msra.mxu0 %v1605
        %1618 = vmatpush.bf16.msra.mxu0 %v1604
        %1619 = vmatmul.bf16.gmra.mxu0 %v1609
        %v1620 = vpop.f32.mrf.mxu0
        %v1621 = vadd.f32 %v1594, %v1620
        %v1622 = vpop.f32.mrf.mxu0
        %1623 = vdwg.mxu0
        %v1624 = vtanh.pop %v1621
        %vm1625 = vcmask 253952
        %1626 = vst.msk [vmem:[%s286] sm:$0x1] %vm1625, %v1624
        %s1627 = sand.u32 %s166, 1
        %s1628 = sand.u32 %s166, 1
        %s1629 = smul.addr %s1628, 24
        %s1630 = scalar_lea.vmem [#allocation2], %s1629
        %s1631 = sand.u32 %s192, 1
        %s1632 = scalar_lea.sflag [#allocation4], %s1631
        %s1633 = sand.u32 %s192, 1
        %s1634 = scalar_lea.vmem [#allocation3], %s1633
        // Predicated region
        $region45: #{pretrained_embedder_forward.1} parent=43 // pred_check
          %p1635 = pneg %p176
        $region46: #{pretrained_embedder_forward.1} parent=43 // pred_check_branch
          %1637 = sbr.rel (%p1635) target = $region48
        $region47: #{pretrained_embedder_forward.1} parent=43 // pred_region
          %s1638 = smul.addr %s22, 8
          %s1639 = scalar_lea.vmem %s6, %s1638
          // Predicated region
          $region49: #{pretrained_embedder_forward.1} parent=47 // pred_check
            _
          $region50: #{pretrained_embedder_forward.1} parent=47 // pred_check_branch
            %1641 = sbr.rel (0) target = $region52
          $region51: #{pretrained_embedder_forward.1} parent=47 // pred_region
            // Predicated region
            $region53: #{pretrained_embedder_forward.1} parent=51 // pred_check
              _
            $region54: #{pretrained_embedder_forward.1} parent=51 // pred_check_branch
              %1643 = sbr.rel (0) target = $region56
            $region55: #{pretrained_embedder_forward.1} parent=51 // pred_region
              // Predicated region
              $region68: #{pretrained_embedder_forward.1} parent=55 // pred_check
                _
              $region69: #{pretrained_embedder_forward.1} parent=55 // pred_check_branch
                %1663 = sbr.rel (0) target = $region71
              $region70: #{pretrained_embedder_forward.1} parent=55 // pred_region
                loop: start=0, step=1, limit=1
                $region72: #{pretrained_embedder_forward.1} parent=70 // loop_pre_header
                  _
                $region73: #{pretrained_embedder_forward.1} parent=70 // loop_header
                  %s1665 = sphi 0, %s1669
                  %p1666 = scmp.ge.s32.totalorder %s1665, 1
                  %s1670 = sphi %s1630, %s1630
                  %s1671 = sphi %s1639, %s1639
                $region74: #{pretrained_embedder_forward.1} parent=70 // loop_header_branch
                  %1668 = sbr.rel (%p1666) target = $region78
                $region75: #{pretrained_embedder_forward.1} parent=70 // loop_body
                  %v1672 = vld [vmem:[%s1670] sm:$0xff]
                  %1673 = vst [vmem:[%s1671] sm:$0xff] %v1672
                  %v1674 = vld [vmem:[%s1670 + $0x8] sm:$0xff]
                  %1675 = vst [vmem:[%s1671 + $0x10] sm:$0xff] %v1674
                  %v1676 = vld [vmem:[%s1670 + $0x10] sm:$0xff]
                  %1677 = vst [vmem:[%s1671 + $0x20] sm:$0xff] %v1676
                $region76: #{pretrained_embedder_forward.1} parent=70 // loop_footer
                  %s1669 = sadd.s32 1, %s1665
                $region77: #{pretrained_embedder_forward.1} parent=70 // loop_footer_branch
                  %1664 = sbr.rel target = $region73
                $region78: #{pretrained_embedder_forward.1} parent=70 // loop_exit
                  _
              $region71: #{pretrained_embedder_forward.1} parent=55 // pred_fallthru
                _
              // Predicated region
              $region79: #{pretrained_embedder_forward.1} parent=55 // pred_check
                _
              $region80: #{pretrained_embedder_forward.1} parent=55 // pred_check_branch
                %1679 = sbr.rel target = $region82
              $region81: #{pretrained_embedder_forward.1} parent=55 // pred_region
                _
              $region82: #{pretrained_embedder_forward.1} parent=55 // pred_fallthru
                _
            $region56: #{pretrained_embedder_forward.1} parent=51 // pred_fallthru
              _
            // Predicated region
            $region57: #{pretrained_embedder_forward.1} parent=51 // pred_check
              _
            $region58: #{pretrained_embedder_forward.1} parent=51 // pred_check_branch
              %1645 = sbr.rel target = $region60
            $region59: #{pretrained_embedder_forward.1} parent=51 // pred_region
              %s1647 = ssub.s32 256, 1
              loop: start=0, step=1, limit=1
              $region61: #{pretrained_embedder_forward.1} parent=59 // loop_pre_header
                _
              $region62: #{pretrained_embedder_forward.1} parent=59 // loop_header
                %s1649 = sphi 0, %s1653
                %p1650 = scmp.ge.s32.totalorder %s1649, 1
                %s1654 = sphi %s1630, %s1630
                %s1655 = sphi %s1639, %s1639
              $region63: #{pretrained_embedder_forward.1} parent=59 // loop_header_branch
                %1652 = sbr.rel (%p1650) target = $region67
              $region64: #{pretrained_embedder_forward.1} parent=59 // loop_body
                %v1656 = vld [vmem:[%s1654] sm:%s1647]
                %1657 = vst [vmem:[%s1655] sm:%s1647] %v1656
                %v1658 = vld [vmem:[%s1654 + $0x8] sm:%s1647]
                %1659 = vst [vmem:[%s1655 + $0x10] sm:%s1647] %v1658
                %v1660 = vld [vmem:[%s1654 + $0x10] sm:%s1647]
                %1661 = vst [vmem:[%s1655 + $0x20] sm:%s1647] %v1660
              $region65: #{pretrained_embedder_forward.1} parent=59 // loop_footer
                %s1653 = sadd.s32 1, %s1649
              $region66: #{pretrained_embedder_forward.1} parent=59 // loop_footer_branch
                %1648 = sbr.rel target = $region62
              $region67: #{pretrained_embedder_forward.1} parent=59 // loop_exit
                _
            $region60: #{pretrained_embedder_forward.1} parent=51 // pred_fallthru
              _
          $region52: #{pretrained_embedder_forward.1} parent=47 // pred_fallthru
            _
          %1680 = vnop
        $region48: #{pretrained_embedder_forward.1} parent=43 // pred_fallthru
          _
        // Predicated region
        $region83: #{pretrained_embedder_forward.1} parent=43 // pred_check
          %p1681 = pneg %p202
        $region84: #{pretrained_embedder_forward.1} parent=43 // pred_check_branch
          %1683 = sbr.rel (%p1681) target = $region86
        $region85: #{pretrained_embedder_forward.1} parent=43 // pred_region
          %1685 = vsyncadd %s1632, 0
          %s1686 = scalar_lea.hbm %s7, %s22
          %s1688 = sshll.u32 %s1634, 4
          %s1689 = int_to_ptr.vmem [resolvable:$true] %s1688
          %s1690 = sshll.u32 %s1686, 4
          %s1691 = int_to_ptr.hbm [resolvable:$true] %s1690
          %1693 = dma.vmem_to_hbm [thread:$0]  %s1689, 16, %s1691, %s1632
        $region86: #{pretrained_embedder_forward.1} parent=43 // pred_fallthru
          _
      $region44: #{pretrained_embedder_forward.1} parent=5 // pred_fallthru
        _
      %p1694 = scmp.le.s32.totalorder 2, %s17
      // Predicated region
      $region87: #{pretrained_embedder_forward.1} parent=5 // pred_check
        %p1695 = pneg %p1694
      $region88: #{pretrained_embedder_forward.1} parent=5 // pred_check_branch
        %1697 = sbr.rel (%p1695) target = $region90
      $region89: #{pretrained_embedder_forward.1} parent=5 // pred_region
        %s1698 = ssub.s32 %s17, 2
        // Predicated region
        $region91: #{pretrained_embedder_forward.1} parent=89 // pred_check
          %p1699 = pneg %p182
        $region92: #{pretrained_embedder_forward.1} parent=89 // pred_check_branch
          %1701 = sbr.rel (%p1699) target = $region94
        $region93: #{pretrained_embedder_forward.1} parent=89 // pred_region
          %s1702 = sand.u32 %s167, 1
          %s1703 = sand.u32 %s167, 1
          %s1704 = smul.addr %s1703, 24
          %s1705 = scalar_lea.vmem [#allocation2], %s1704
        $region94: #{pretrained_embedder_forward.1} parent=89 // pred_fallthru
          _
        // Predicated region
        $region95: #{pretrained_embedder_forward.1} parent=89 // pred_check
          %p1706 = pneg %p208
        $region96: #{pretrained_embedder_forward.1} parent=89 // pred_check_branch
          %1708 = sbr.rel (%p1706) target = $region98
        $region97: #{pretrained_embedder_forward.1} parent=89 // pred_region
          %s1709 = sand.u32 %s193, 1
          %s1710 = scalar_lea.sflag [#allocation4], %s1709
          %s1711 = sand.u32 %s193, 1
          %s1712 = scalar_lea.vmem [#allocation3], %s1711
          %1714 = dma.done %s1710, 16
        $region98: #{pretrained_embedder_forward.1} parent=89 // pred_fallthru
          _
      $region90: #{pretrained_embedder_forward.1} parent=5 // pred_fallthru
        _
    $region6: #{pretrained_embedder_forward.1} parent=1 // loop_footer
      %s21 = sadd.s32 1, %s17
    $region7: #{pretrained_embedder_forward.1} parent=1 // loop_footer_branch
      %16 = sbr.rel target = $region3
    $region8: #{pretrained_embedder_forward.1} parent=1 // loop_exit
      _
    %1715 = vsyncpa [#allocation4], 1
    %s1716 = scalar_lea.sflag [#allocation4], 1
    %1717 = vsyncpa %s1716, 1

</llo_original>
